<compile_context>
chip_gen: v7x
topology: tpu7x:2x2x1
jax: 0.10.0
libtpu: 0.0.40
codegen_flags: <defaults>
</compile_context>

<pallas_src>
import functools

import jax
import jax.numpy as jnp
from jax.experimental import pallas as pl
from jax.experimental.pallas import tpu as pltpu


def _round_up(x, m):
    return ((x + m - 1) // m) * m


def rnn_seq_kernel(x_ref, h0_ref, wi_d_ref, wi_h_ref, bi_ref, wo_ref, bo_ref,
                   hid_ref, out_ref, h_carry):
    """One (batch_block, timestep) grid point.

    x_ref   : (1, blk, d_p)  current timestep's data tile
    h0_ref  : (blk, h_p)     initial hidden (only used at t == 0)
    wi_d/wi_h/wo : resident, pre-transposed, zero-padded weights
    bi/bo   : f32 biases (1, h_p) / (1, o_p)
    hid_ref/out_ref : (1, blk, h_p) / (1, blk, o_p) per-step outputs
    h_carry : f32 VMEM scratch (blk, h_p) carrying the hidden state over t
    """
    t = pl.program_id(1)

    @pl.when(t == 0)
    def _():
        h_carry[...] = h0_ref[...].astype(jnp.float32)

    # hidden = data_t @ Wi_data^T + h_{t-1} @ Wi_hidden^T + bi   (no concat)
    hidden = (
        jnp.dot(x_ref[0], wi_d_ref[...], preferred_element_type=jnp.float32)
        + jnp.dot(h_carry[...].astype(wi_h_ref.dtype), wi_h_ref[...],
                  preferred_element_type=jnp.float32)
        + bi_ref[...]
    )
    # output = hidden @ Wo^T + bo   (f32 accumulation, cast on store)
    output = jnp.dot(hidden.astype(wo_ref.dtype), wo_ref[...],
                     preferred_element_type=jnp.float32) + bo_ref[...]

    h_carry[...] = hidden                       # carried in f32 between steps
    hid_ref[0] = hidden.astype(hid_ref.dtype)
    out_ref[0] = output.astype(out_ref.dtype)


def prepare_rnn_params(w_i2h, b_i2h, w_h2o, b_h2o, data_size,
                       compute_dtype=jnp.bfloat16):
    """One-time parameter prep (split / transpose / zero-pad to lane multiples).

    w_i2h: [hidden, data+hidden] (PyTorch layout)   b_i2h: [hidden]
    w_h2o: [output, hidden]                         b_h2o: [output]
    """
    hidden_size, input_size = w_i2h.shape
    output_size = w_h2o.shape[0]
    assert input_size == data_size + hidden_size

    d_p = _round_up(data_size, 128)
    h_p = _round_up(hidden_size, 128)
    o_p = _round_up(output_size, 128)

    wi_d = jnp.pad(w_i2h[:, :data_size].T.astype(compute_dtype),
                   ((0, d_p - data_size), (0, h_p - hidden_size)))
    wi_h = jnp.pad(w_i2h[:, data_size:].T.astype(compute_dtype),
                   ((0, h_p - hidden_size), (0, h_p - hidden_size)))
    wo = jnp.pad(w_h2o.T.astype(compute_dtype),
                 ((0, h_p - hidden_size), (0, o_p - output_size)))
    bi = jnp.pad(b_i2h.astype(jnp.float32)[None, :],
                 ((0, 0), (0, h_p - hidden_size)))
    bo = jnp.pad(b_h2o.astype(jnp.float32)[None, :],
                 ((0, 0), (0, o_p - output_size)))

    sizes = dict(data_size=data_size, hidden_size=hidden_size,
                 output_size=output_size)
    return (wi_d, wi_h, bi, wo, bo), sizes


@functools.partial(jax.jit, static_argnames=("data_size", "hidden_size",
                                             "output_size", "block_b",
                                             "single_buffer_weights"))
def _rnn_sequence_impl(data_seq, last_hidden, wi_d, wi_h, bi, wo, bo, *,
                       data_size, hidden_size, output_size, block_b,
                       single_buffer_weights):
    B, T, d_in = data_seq.shape
    assert d_in == data_size
    d_p, h_p = wi_d.shape
    o_p = wo.shape[1]
    compute_dtype = wi_d.dtype
    out_dtype = jnp.result_type(data_seq.dtype, last_hidden.dtype)

    # Batch tiling: round to the sublane-packing multiple of the compute dtype
    # (8 rows for f32, 16 for bf16, 32 for int8).
    itemsize = jnp.dtype(compute_dtype).itemsize
    row_mult = 8 * max(1, 4 // itemsize)
    blk = min(block_b, _round_up(B, row_mult))
    blk = _round_up(blk, row_mult)
    b_p = _round_up(B, blk)
    # Give v7x's second TensorCore a block when there'd otherwise be only one.
    if b_p // blk == 1 and b_p % (2 * row_mult) == 0:
        blk = b_p // 2
    num_b = b_p // blk

    # Pad inputs once (lane dims to 128 multiples, batch to the block multiple);
    # time axis goes first so per-step tiles are contiguous (blk, d_p) slabs.
    x = jnp.transpose(data_seq.astype(compute_dtype), (1, 0, 2))
    x = jnp.pad(x, ((0, 0), (0, b_p - B), (0, d_p - data_size)))
    h0 = jnp.pad(last_hidden.astype(compute_dtype),
                 ((0, b_p - B), (0, h_p - hidden_size)))

    # Grid-invariant operands: constant index_map; single-buffer if allowed.
    def const_spec(shape):
        if single_buffer_weights:
            return pl.BlockSpec(shape, lambda b, t: (0, 0),
                                pipeline_mode=pl.Buffered(1))
        return pl.BlockSpec(shape, lambda b, t: (0, 0))

    # Explicit VMEM budget (v7x has only 64 MiB physical / 32 MiB default scoped).
    od = jnp.dtype(out_dtype).itemsize
    wbuf = 1 if single_buffer_weights else 2
    weight_bytes = itemsize * (d_p * h_p + h_p * h_p + h_p * o_p) + 4 * (h_p + o_p)
    act_bytes = 2 * (itemsize * blk * (d_p + h_p) + od * blk * (h_p + o_p))
    scratch_bytes = 4 * blk * h_p
    vmem_need = wbuf * weight_bytes + act_bytes + scratch_bytes
    vmem_limit = int(min(100 * 2**20, max(2 * vmem_need, 16 * 2**20)))

    flops = 2 * T * b_p * (d_p * h_p + h_p * h_p + h_p * o_p)
    bytes_accessed = (
        itemsize * (T * b_p * d_p + b_p * h_p + d_p * h_p + h_p * h_p + h_p * o_p)
        + 4 * (h_p + o_p)
        + od * T * b_p * (h_p + o_p))

    hid_seq, out_seq = pl.pallas_call(
        rnn_seq_kernel,
        out_shape=(
            jax.ShapeDtypeStruct((T, b_p, h_p), out_dtype),
            jax.ShapeDtypeStruct((T, b_p, o_p), out_dtype),
        ),
        grid=(num_b, T),
        in_specs=[
            pl.BlockSpec((1, blk, d_p), lambda b, t: (t, b, 0)),   # data_t tile
            pl.BlockSpec((blk, h_p), lambda b, t: (b, 0)),         # initial hidden
            const_spec((d_p, h_p)),                                # Wi_data^T
            const_spec((h_p, h_p)),                                # Wi_hidden^T
            const_spec((1, h_p)),                                  # bi (f32)
            const_spec((h_p, o_p)),                                # Wo^T
            const_spec((1, o_p)),                                  # bo (f32)
        ],
        out_specs=(
            pl.BlockSpec((1, blk, h_p), lambda b, t: (t, b, 0)),
            pl.BlockSpec((1, blk, o_p), lambda b, t: (t, b, 0)),
        ),
        scratch_shapes=[pltpu.VMEM((blk, h_p), jnp.float32)],      # hidden carry
        compiler_params=pltpu.CompilerParams(
            dimension_semantics=("parallel", "arbitrary"),
            vmem_limit_bytes=vmem_limit),
        cost_estimate=pl.CostEstimate(flops=flops, transcendentals=0,
                                      bytes_accessed=bytes_accessed),
    )(x, h0, wi_d, wi_h, bi, wo, bo)

    return hid_seq[:, :B, :hidden_size], out_seq[:, :B, :output_size]


_SINGLE_BUFFER_OK = True  # flips to False if pl.Buffered(1) is rejected


def rnn_sequence_forward(data_seq, last_hidden, wi_d, wi_h, bi, wo, bo, *,
                         data_size, hidden_size, output_size, block_b=512):
    """Apply the RNN cell over data_seq[:, t] for t = 0..T-1 in ONE kernel.

    data_seq: [B, T, data_size], last_hidden: [B, hidden_size].
    Returns (hiddens [T, B, hidden_size], outputs [T, B, output_size]).
    """
    global _SINGLE_BUFFER_OK
    kw = dict(data_size=data_size, hidden_size=hidden_size,
              output_size=output_size, block_b=block_b)
    if _SINGLE_BUFFER_OK:
        try:
            return _rnn_sequence_impl(data_seq, last_hidden, wi_d, wi_h, bi, wo,
                                      bo, single_buffer_weights=True, **kw)
        except Exception:
            _SINGLE_BUFFER_OK = False  # fall back to default double-buffering
    return _rnn_sequence_impl(data_seq, last_hidden, wi_d, wi_h, bi, wo, bo,
                              single_buffer_weights=False, **kw)


def rnn_forward(data, last_hidden, wi_d, wi_h, bi, wo, bo, *,
                data_size, hidden_size, output_size, block_b=512):
    """Single-step forward matching the PyTorch module: returns (hidden, output)."""
    hid_seq, out_seq = rnn_sequence_forward(
        data[:, None, :], last_hidden, wi_d, wi_h, bi, wo, bo,
        data_size=data_size, hidden_size=hidden_size, output_size=output_size,
        block_b=block_b)
    return hid_seq[0], out_seq[0]


if __name__ == "__main__":
    batch, T = 8, 8
    data_size, hidden_size, output_size = 32, 32, 16
    input_size = data_size + hidden_size

    key = jax.random.PRNGKey(0)
    k_data, k_hid, k_wi, k_bi, k_wo, k_bo = jax.random.split(key, 6)

    data_seq = jax.random.normal(k_data, (batch, T, data_size), dtype=jnp.float32)
    h0 = jax.random.normal(k_hid, (batch, hidden_size), dtype=jnp.float32)

    bound_i = 1.0 / (input_size ** 0.5)
    bound_o = 1.0 / (hidden_size ** 0.5)
    w_i2h = jax.random.uniform(k_wi, (hidden_size, input_size), jnp.float32,
                               -bound_i, bound_i)
    b_i2h = jax.random.uniform(k_bi, (hidden_size,), jnp.float32, -bound_i, bound_i)
    w_h2o = jax.random.uniform(k_wo, (output_size, hidden_size), jnp.float32,
                               -bound_o, bound_o)
    b_h2o = jax.random.uniform(k_bo, (output_size,), jnp.float32, -bound_o, bound_o)

    # Pure-JAX reference (matches the PyTorch forward, applied over T steps).
    hp = jax.lax.Precision.HIGHEST
    h = h0
    hid_ref_steps, out_ref_steps = [], []
    for t in range(T):
        xcat = jnp.concatenate([data_seq[:, t], h], axis=1)
        h = jnp.dot(xcat, w_i2h.T, precision=hp) + b_i2h
        o = jnp.dot(h, w_h2o.T, precision=hp) + b_h2o
        hid_ref_steps.append(h)
        out_ref_steps.append(o)
    hidden_ref_seq = jnp.stack(hid_ref_steps)   # [T, B, hidden]
    output_ref_seq = jnp.stack(out_ref_steps)   # [T, B, output]

    # ---- f32 compute path (tight tolerance) ----
    params_f32, sizes = prepare_rnn_params(w_i2h, b_i2h, w_h2o, b_h2o,
                                           data_size, compute_dtype=jnp.float32)
    hid_f32, out_f32 = rnn_sequence_forward(data_seq, h0, *params_f32, **sizes)
    jax.block_until_ready((hid_f32, out_f32))
    assert hid_f32.shape == (T, batch, hidden_size)
    assert out_f32.shape == (T, batch, output_size)
    assert jnp.allclose(hid_f32, hidden_ref_seq, atol=1e-3, rtol=1e-3)
    assert jnp.allclose(out_f32, output_ref_seq, atol=1e-3, rtol=1e-3)

    # ---- bf16 MXU path (default; f32 accumulation), looser tolerance ----
    params_bf16, sizes = prepare_rnn_params(w_i2h, b_i2h, w_h2o, b_h2o, data_size)
    hid_bf, out_bf = rnn_sequence_forward(data_seq, h0, *params_bf16, **sizes)
    jax.block_until_ready((hid_bf, out_bf))
    assert jnp.allclose(hid_bf, hidden_ref_seq, atol=1e-1, rtol=1e-1)
    assert jnp.allclose(out_bf, output_ref_seq, atol=1e-1, rtol=1e-1)

    # ---- single-step call (exact module forward semantics) ----
    hidden1, output1 = rnn_forward(data_seq[:, 0], h0, *params_f32, **sizes)
    jax.block_until_ready((hidden1, output1))
    assert hidden1.shape == (batch, hidden_size)
    assert output1.shape == (batch, output_size)
    assert jnp.allclose(hidden1, hidden_ref_seq[0], atol=1e-3, rtol=1e-3)
    assert jnp.allclose(output1, output_ref_seq[0], atol=1e-3, rtol=1e-3)

    print("KERNEL_OK")
</pallas_src>

<mosaic_0001>
module attributes {stable_mosaic.version = 11 : i64} {
  func.func @rnn_seq_kernel(%arg0: i32, %arg1: i32, %arg2: memref<1x8x128xf32, #tpu.memory_space<vmem>>, %arg3: memref<8x128xf32, #tpu.memory_space<vmem>>, %arg4: memref<128x128xf32, #tpu.memory_space<vmem>>, %arg5: memref<128x128xf32, #tpu.memory_space<vmem>>, %arg6: memref<1x128xf32, #tpu.memory_space<vmem>>, %arg7: memref<128x128xf32, #tpu.memory_space<vmem>>, %arg8: memref<1x128xf32, #tpu.memory_space<vmem>>, %arg9: memref<1x8x128xf32, #tpu.memory_space<vmem>>, %arg10: memref<1x8x128xf32, #tpu.memory_space<vmem>>, %arg11: memref<8x128xf32, #tpu.memory_space<vmem>>) attributes {dimension_semantics = [#tpu.dimension_semantics<parallel>, #tpu.dimension_semantics<arbitrary>], iteration_bounds = array<i64: 1, 8>, scalar_prefetch = 0 : i64, scratch_operands = 1 : i64, tpu.core_type = #tpu.core_type<tc>, window_params = [{transform_indices = @transform_0, window_bounds = array<i64: 1, 8, 128>}, {transform_indices = @transform_1, window_bounds = array<i64: 8, 128>}, {pipeline_mode = #tpu.pipeline_mode<synchronous>, transform_indices = @transform_2, window_bounds = array<i64: 128, 128>}, {pipeline_mode = #tpu.pipeline_mode<synchronous>, transform_indices = @transform_3, window_bounds = array<i64: 128, 128>}, {pipeline_mode = #tpu.pipeline_mode<synchronous>, transform_indices = @transform_4, window_bounds = array<i64: 1, 128>}, {pipeline_mode = #tpu.pipeline_mode<synchronous>, transform_indices = @transform_5, window_bounds = array<i64: 128, 128>}, {pipeline_mode = #tpu.pipeline_mode<synchronous>, transform_indices = @transform_6, window_bounds = array<i64: 1, 128>}, {transform_indices = @transform_7, window_bounds = array<i64: 1, 8, 128>}, {transform_indices = @transform_8, window_bounds = array<i64: 1, 8, 128>}]} {
    %c0_i32 = arith.constant 0 : i32
    %0 = arith.cmpi eq, %arg1, %c0_i32 : i32
    %1 = arith.extui %0 : i1 to i32
    %c0_i32_0 = arith.constant 0 : i32
    %2 = arith.cmpi ne, %1, %c0_i32_0 : i32
    scf.if %2 {
      %c0_25 = arith.constant 0 : index
      %c0_26 = arith.constant 0 : index
      %26 = vector.load %arg3[%c0_25, %c0_26] : memref<8x128xf32, #tpu.memory_space<vmem>>, vector<8x128xf32>
      %c0_27 = arith.constant 0 : index
      %c0_28 = arith.constant 0 : index
      %27 = vector.load %arg11[%c0_27, %c0_28] : memref<8x128xf32, #tpu.memory_space<vmem>>, vector<8x128xf32>
      tpu.vector_store %arg11[%c0_27, %c0_28], %26 {strides = array<i32>} : memref<8x128xf32, #tpu.memory_space<vmem>>, vector<8x128xf32>,
    } else {
    }
    %c0 = arith.constant 0 : index
    %c0_1 = arith.constant 0 : index
    %c0_2 = arith.constant 0 : index
    %3 = vector.load %arg2[%c0, %c0_1, %c0_2] : memref<1x8x128xf32, #tpu.memory_space<vmem>>, vector<1x8x128xf32>
    %4 = vector.shape_cast %3 : vector<1x8x128xf32> to vector<8x128xf32>
    %c0_3 = arith.constant 0 : index
    %c0_4 = arith.constant 0 : index
    %5 = vector.load %arg4[%c0_3, %c0_4] : memref<128x128xf32, #tpu.memory_space<vmem>>, vector<128x128xf32>
    %cst = arith.constant dense<0.000000e+00> : vector<8x128xf32>
    %6 = tpu.matmul %4, %5, %cst {dimension_numbers = #tpu.dot_dimension_numbers<[1], [0], [0], [1], [0, 0, 1, 1], [], []>} : vector<8x128xf32>, vector<128x128xf32>, vector<8x128xf32> -> vector<8x128xf32>
    %c0_5 = arith.constant 0 : index
    %c0_6 = arith.constant 0 : index
    %7 = vector.load %arg11[%c0_5, %c0_6] : memref<8x128xf32, #tpu.memory_space<vmem>>, vector<8x128xf32>
    %c0_7 = arith.constant 0 : index
    %c0_8 = arith.constant 0 : index
    %8 = vector.load %arg5[%c0_7, %c0_8] : memref<128x128xf32, #tpu.memory_space<vmem>>, vector<128x128xf32>
    %cst_9 = arith.constant dense<0.000000e+00> : vector<8x128xf32>
    %9 = tpu.matmul %7, %8, %cst_9 {dimension_numbers = #tpu.dot_dimension_numbers<[1], [0], [0], [1], [0, 0, 1, 1], [], []>} : vector<8x128xf32>, vector<128x128xf32>, vector<8x128xf32> -> vector<8x128xf32>
    %10 = arith.addf %6, %9 : vector<8x128xf32>
    %c0_10 = arith.constant 0 : index
    %c0_11 = arith.constant 0 : index
    %11 = vector.load %arg6[%c0_10, %c0_11] : memref<1x128xf32, #tpu.memory_space<vmem>>, vector<1x128xf32>
    %12 = vector.broadcast %11 : vector<1x128xf32> to vector<8x128xf32>
    %13 = arith.addf %10, %12 : vector<8x128xf32>
    %c0_12 = arith.constant 0 : index
    %c0_13 = arith.constant 0 : index
    %14 = vector.load %arg7[%c0_12, %c0_13] : memref<128x128xf32, #tpu.memory_space<vmem>>, vector<128x128xf32>
    %cst_14 = arith.constant dense<0.000000e+00> : vector<8x128xf32>
    %15 = tpu.matmul %13, %14, %cst_14 {dimension_numbers = #tpu.dot_dimension_numbers<[1], [0], [0], [1], [0, 0, 1, 1], [], []>} : vector<8x128xf32>, vector<128x128xf32>, vector<8x128xf32> -> vector<8x128xf32>
    %c0_15 = arith.constant 0 : index
    %c0_16 = arith.constant 0 : index
    %16 = vector.load %arg8[%c0_15, %c0_16] : memref<1x128xf32, #tpu.memory_space<vmem>>, vector<1x128xf32>
    %17 = vector.broadcast %16 : vector<1x128xf32> to vector<8x128xf32>
    %18 = arith.addf %15, %17 : vector<8x128xf32>
    %c0_17 = arith.constant 0 : index
    %c0_18 = arith.constant 0 : index
    %19 = vector.load %arg11[%c0_17, %c0_18] : memref<8x128xf32, #tpu.memory_space<vmem>>, vector<8x128xf32>
    tpu.vector_store %arg11[%c0_17, %c0_18], %13 {strides = array<i32>} : memref<8x128xf32, #tpu.memory_space<vmem>>, vector<8x128xf32>,
    %c0_19 = arith.constant 0 : index
    %c0_20 = arith.constant 0 : index
    %c0_21 = arith.constant 0 : index
    %20 = vector.load %arg9[%c0_19, %c0_20, %c0_21] : memref<1x8x128xf32, #tpu.memory_space<vmem>>, vector<1x8x128xf32>
    %21 = vector.shape_cast %20 : vector<1x8x128xf32> to vector<8x128xf32>
    %22 = vector.shape_cast %13 : vector<8x128xf32> to vector<1x8x128xf32>
    tpu.vector_store %arg9[%c0_19, %c0_20, %c0_21], %22 {strides = array<i32>} : memref<1x8x128xf32, #tpu.memory_space<vmem>>, vector<1x8x128xf32>,
    %c0_22 = arith.constant 0 : index
    %c0_23 = arith.constant 0 : index
    %c0_24 = arith.constant 0 : index
    %23 = vector.load %arg10[%c0_22, %c0_23, %c0_24] : memref<1x8x128xf32, #tpu.memory_space<vmem>>, vector<1x8x128xf32>
    %24 = vector.shape_cast %23 : vector<1x8x128xf32> to vector<8x128xf32>
    %25 = vector.shape_cast %18 : vector<8x128xf32> to vector<1x8x128xf32>
    tpu.vector_store %arg10[%c0_22, %c0_23, %c0_24], %25 {strides = array<i32>} : memref<1x8x128xf32, #tpu.memory_space<vmem>>, vector<1x8x128xf32>,
    return
  }
  func.func @transform_0(%arg0: i32, %arg1: i32) -> (i32, i32, i32) {
    %c0_i32 = arith.constant 0 : i32
    %c0_i32_0 = arith.constant 0 : i32
    return %arg1, %arg0, %c0_i32 : i32, i32, i32
  }
  func.func @transform_1(%arg0: i32, %arg1: i32) -> (i32, i32) {
    %c0_i32 = arith.constant 0 : i32
    %c0_i32_0 = arith.constant 0 : i32
    return %arg0, %c0_i32 : i32, i32
  }
  func.func @transform_2(%arg0: i32, %arg1: i32) -> (i32, i32) {
    %c0_i32 = arith.constant 0 : i32
    %c0_i32_0 = arith.constant 0 : i32
    %c0_i32_1 = arith.constant 0 : i32
    return %c0_i32, %c0_i32_0 : i32, i32
  }
  func.func @transform_3(%arg0: i32, %arg1: i32) -> (i32, i32) {
    %c0_i32 = arith.constant 0 : i32
    %c0_i32_0 = arith.constant 0 : i32
    %c0_i32_1 = arith.constant 0 : i32
    return %c0_i32, %c0_i32_0 : i32, i32
  }
  func.func @transform_4(%arg0: i32, %arg1: i32) -> (i32, i32) {
    %c0_i32 = arith.constant 0 : i32
    %c0_i32_0 = arith.constant 0 : i32
    %c0_i32_1 = arith.constant 0 : i32
    return %c0_i32, %c0_i32_0 : i32, i32
  }
  func.func @transform_5(%arg0: i32, %arg1: i32) -> (i32, i32) {
    %c0_i32 = arith.constant 0 : i32
    %c0_i32_0 = arith.constant 0 : i32
    %c0_i32_1 = arith.constant 0 : i32
    return %c0_i32, %c0_i32_0 : i32, i32
  }
  func.func @transform_6(%arg0: i32, %arg1: i32) -> (i32, i32) {
    %c0_i32 = arith.constant 0 : i32
    %c0_i32_0 = arith.constant 0 : i32
    %c0_i32_1 = arith.constant 0 : i32
    return %c0_i32, %c0_i32_0 : i32, i32
  }
  func.func @transform_7(%arg0: i32, %arg1: i32) -> (i32, i32, i32) {
    %c0_i32 = arith.constant 0 : i32
    %c0_i32_0 = arith.constant 0 : i32
    return %arg1, %arg0, %c0_i32 : i32, i32, i32
  }
  func.func @transform_8(%arg0: i32, %arg1: i32) -> (i32, i32, i32) {
    %c0_i32 = arith.constant 0 : i32
    %c0_i32_0 = arith.constant 0 : i32
    return %arg1, %arg0, %c0_i32 : i32, i32, i32
  }
}

module attributes {stable_mosaic.version = 11 : i64} {
  func.func @rnn_seq_kernel(%arg0: i32, %arg1: i32, %arg2: memref<1x8x128xf32, #tpu.memory_space<vmem>>, %arg3: memref<8x128xf32, #tpu.memory_space<vmem>>, %arg4: memref<128x128xf32, #tpu.memory_space<vmem>>, %arg5: memref<128x128xf32, #tpu.memory_space<vmem>>, %arg6: memref<1x128xf32, #tpu.memory_space<vmem>>, %arg7: memref<128x128xf32, #tpu.memory_space<vmem>>, %arg8: memref<1x128xf32, #tpu.memory_space<vmem>>, %arg9: memref<1x8x128xf32, #tpu.memory_space<vmem>>, %arg10: memref<1x8x128xf32, #tpu.memory_space<vmem>>, %arg11: memref<8x128xf32, #tpu.memory_space<vmem>>) attributes {dimension_semantics = [#tpu.dimension_semantics<parallel>, #tpu.dimension_semantics<arbitrary>], iteration_bounds = array<i64: 1, 8>, scalar_prefetch = 0 : i64, scratch_operands = 1 : i64, tpu.core_type = #tpu.core_type<tc>, window_params = [{transform_indices = @transform_0, window_bounds = array<i64: 1, 8, 128>}, {transform_indices = @transform_1, window_bounds = array<i64: 8, 128>}, {pipeline_mode = #tpu.pipeline_mode<synchronous>, transform_indices = @transform_2, window_bounds = array<i64: 128, 128>}, {pipeline_mode = #tpu.pipeline_mode<synchronous>, transform_indices = @transform_3, window_bounds = array<i64: 128, 128>}, {pipeline_mode = #tpu.pipeline_mode<synchronous>, transform_indices = @transform_4, window_bounds = array<i64: 1, 128>}, {pipeline_mode = #tpu.pipeline_mode<synchronous>, transform_indices = @transform_5, window_bounds = array<i64: 128, 128>}, {pipeline_mode = #tpu.pipeline_mode<synchronous>, transform_indices = @transform_6, window_bounds = array<i64: 1, 128>}, {transform_indices = @transform_7, window_bounds = array<i64: 1, 8, 128>}, {transform_indices = @transform_8, window_bounds = array<i64: 1, 8, 128>}]} {
    %c0_i32 = arith.constant 0 : i32
    %0 = arith.cmpi eq, %arg1, %c0_i32 : i32
    %1 = arith.extui %0 : i1 to i32
    %c0_i32_0 = arith.constant 0 : i32
    %2 = arith.cmpi ne, %1, %c0_i32_0 : i32
    scf.if %2 {
      %c0_25 = arith.constant 0 : index
      %c0_26 = arith.constant 0 : index
      %26 = vector.load %arg3[%c0_25, %c0_26] : memref<8x128xf32, #tpu.memory_space<vmem>>, vector<8x128xf32>
      %c0_27 = arith.constant 0 : index
      %c0_28 = arith.constant 0 : index
      %27 = vector.load %arg11[%c0_27, %c0_28] : memref<8x128xf32, #tpu.memory_space<vmem>>, vector<8x128xf32>
      tpu.vector_store %arg11[%c0_27, %c0_28], %26 {strides = array<i32>} : memref<8x128xf32, #tpu.memory_space<vmem>>, vector<8x128xf32>,
    } else {
    }
    %c0 = arith.constant 0 : index
    %c0_1 = arith.constant 0 : index
    %c0_2 = arith.constant 0 : index
    %3 = vector.load %arg2[%c0, %c0_1, %c0_2] : memref<1x8x128xf32, #tpu.memory_space<vmem>>, vector<1x8x128xf32>
    %4 = vector.shape_cast %3 : vector<1x8x128xf32> to vector<8x128xf32>
    %c0_3 = arith.constant 0 : index
    %c0_4 = arith.constant 0 : index
    %5 = vector.load %arg4[%c0_3, %c0_4] : memref<128x128xf32, #tpu.memory_space<vmem>>, vector<128x128xf32>
    %cst = arith.constant dense<0.000000e+00> : vector<8x128xf32>
    %6 = tpu.matmul %4, %5, %cst {dimension_numbers = #tpu.dot_dimension_numbers<[1], [0], [0], [1], [0, 0, 1, 1], [], []>} : vector<8x128xf32>, vector<128x128xf32>, vector<8x128xf32> -> vector<8x128xf32>
    %c0_5 = arith.constant 0 : index
    %c0_6 = arith.constant 0 : index
    %7 = vector.load %arg11[%c0_5, %c0_6] : memref<8x128xf32, #tpu.memory_space<vmem>>, vector<8x128xf32>
    %c0_7 = arith.constant 0 : index
    %c0_8 = arith.constant 0 : index
    %8 = vector.load %arg5[%c0_7, %c0_8] : memref<128x128xf32, #tpu.memory_space<vmem>>, vector<128x128xf32>
    %cst_9 = arith.constant dense<0.000000e+00> : vector<8x128xf32>
    %9 = tpu.matmul %7, %8, %cst_9 {dimension_numbers = #tpu.dot_dimension_numbers<[1], [0], [0], [1], [0, 0, 1, 1], [], []>} : vector<8x128xf32>, vector<128x128xf32>, vector<8x128xf32> -> vector<8x128xf32>
    %10 = arith.addf %6, %9 : vector<8x128xf32>
    %c0_10 = arith.constant 0 : index
    %c0_11 = arith.constant 0 : index
    %11 = vector.load %arg6[%c0_10, %c0_11] : memref<1x128xf32, #tpu.memory_space<vmem>>, vector<1x128xf32>
    %12 = vector.broadcast %11 : vector<1x128xf32> to vector<8x128xf32>
    %13 = arith.addf %10, %12 : vector<8x128xf32>
    %c0_12 = arith.constant 0 : index
    %c0_13 = arith.constant 0 : index
    %14 = vector.load %arg7[%c0_12, %c0_13] : memref<128x128xf32, #tpu.memory_space<vmem>>, vector<128x128xf32>
    %cst_14 = arith.constant dense<0.000000e+00> : vector<8x128xf32>
    %15 = tpu.matmul %13, %14, %cst_14 {dimension_numbers = #tpu.dot_dimension_numbers<[1], [0], [0], [1], [0, 0, 1, 1], [], []>} : vector<8x128xf32>, vector<128x128xf32>, vector<8x128xf32> -> vector<8x128xf32>
    %c0_15 = arith.constant 0 : index
    %c0_16 = arith.constant 0 : index
    %16 = vector.load %arg8[%c0_15, %c0_16] : memref<1x128xf32, #tpu.memory_space<vmem>>, vector<1x128xf32>
    %17 = vector.broadcast %16 : vector<1x128xf32> to vector<8x128xf32>
    %18 = arith.addf %15, %17 : vector<8x128xf32>
    %c0_17 = arith.constant 0 : index
    %c0_18 = arith.constant 0 : index
    %19 = vector.load %arg11[%c0_17, %c0_18] : memref<8x128xf32, #tpu.memory_space<vmem>>, vector<8x128xf32>
    tpu.vector_store %arg11[%c0_17, %c0_18], %13 {strides = array<i32>} : memref<8x128xf32, #tpu.memory_space<vmem>>, vector<8x128xf32>,
    %c0_19 = arith.constant 0 : index
    %c0_20 = arith.constant 0 : index
    %c0_21 = arith.constant 0 : index
    %20 = vector.load %arg9[%c0_19, %c0_20, %c0_21] : memref<1x8x128xf32, #tpu.memory_space<vmem>>, vector<1x8x128xf32>
    %21 = vector.shape_cast %20 : vector<1x8x128xf32> to vector<8x128xf32>
    %22 = vector.shape_cast %13 : vector<8x128xf32> to vector<1x8x128xf32>
    tpu.vector_store %arg9[%c0_19, %c0_20, %c0_21], %22 {strides = array<i32>} : memref<1x8x128xf32, #tpu.memory_space<vmem>>, vector<1x8x128xf32>,
    %c0_22 = arith.constant 0 : index
    %c0_23 = arith.constant 0 : index
    %c0_24 = arith.constant 0 : index
    %23 = vector.load %arg10[%c0_22, %c0_23, %c0_24] : memref<1x8x128xf32, #tpu.memory_space<vmem>>, vector<1x8x128xf32>
    %24 = vector.shape_cast %23 : vector<1x8x128xf32> to vector<8x128xf32>
    %25 = vector.shape_cast %18 : vector<8x128xf32> to vector<1x8x128xf32>
    tpu.vector_store %arg10[%c0_22, %c0_23, %c0_24], %25 {strides = array<i32>} : memref<1x8x128xf32, #tpu.memory_space<vmem>>, vector<1x8x128xf32>,
    return
  }
  func.func @transform_0(%arg0: i32, %arg1: i32) -> (i32, i32, i32) {
    %c0_i32 = arith.constant 0 : i32
    %c0_i32_0 = arith.constant 0 : i32
    return %arg1, %arg0, %c0_i32 : i32, i32, i32
  }
  func.func @transform_1(%arg0: i32, %arg1: i32) -> (i32, i32) {
    %c0_i32 = arith.constant 0 : i32
    %c0_i32_0 = arith.constant 0 : i32
    return %arg0, %c0_i32 : i32, i32
  }
  func.func @transform_2(%arg0: i32, %arg1: i32) -> (i32, i32) {
    %c0_i32 = arith.constant 0 : i32
    %c0_i32_0 = arith.constant 0 : i32
    %c0_i32_1 = arith.constant 0 : i32
    return %c0_i32, %c0_i32_0 : i32, i32
  }
  func.func @transform_3(%arg0: i32, %arg1: i32) -> (i32, i32) {
    %c0_i32 = arith.constant 0 : i32
    %c0_i32_0 = arith.constant 0 : i32
    %c0_i32_1 = arith.constant 0 : i32
    return %c0_i32, %c0_i32_0 : i32, i32
  }
  func.func @transform_4(%arg0: i32, %arg1: i32) -> (i32, i32) {
    %c0_i32 = arith.constant 0 : i32
    %c0_i32_0 = arith.constant 0 : i32
    %c0_i32_1 = arith.constant 0 : i32
    return %c0_i32, %c0_i32_0 : i32, i32
  }
  func.func @transform_5(%arg0: i32, %arg1: i32) -> (i32, i32) {
    %c0_i32 = arith.constant 0 : i32
    %c0_i32_0 = arith.constant 0 : i32
    %c0_i32_1 = arith.constant 0 : i32
    return %c0_i32, %c0_i32_0 : i32, i32
  }
  func.func @transform_6(%arg0: i32, %arg1: i32) -> (i32, i32) {
    %c0_i32 = arith.constant 0 : i32
    %c0_i32_0 = arith.constant 0 : i32
    %c0_i32_1 = arith.constant 0 : i32
    return %c0_i32, %c0_i32_0 : i32, i32
  }
  func.func @transform_7(%arg0: i32, %arg1: i32) -> (i32, i32, i32) {
    %c0_i32 = arith.constant 0 : i32
    %c0_i32_0 = arith.constant 0 : i32
    return %arg1, %arg0, %c0_i32 : i32, i32, i32
  }
  func.func @transform_8(%arg0: i32, %arg1: i32) -> (i32, i32, i32) {
    %c0_i32 = arith.constant 0 : i32
    %c0_i32_0 = arith.constant 0 : i32
    return %arg1, %arg0, %c0_i32 : i32, i32, i32
  }
}

</mosaic_0001>

<llo_original>
// kernel: _rnn_sequence_impl.1
$region0: #{_rnn_sequence_impl.1}
  #allocation0 [shape = 'u32[]', space=smem, size = 0x4, offset = 0x4, fixed_abs, tag = 'smem constant byte address 0x4 - core index']
  #allocation1 [shape = 'u32[144,128]{1,0:T(1,128)}', space=vmem, size = 0x12000, scoped, tag = 'internal scratch']
  #allocation2 [shape = 'f32[8,128]{1,0:T(8,128)}', space=vmem, size = 0x1000, scoped, tag = 'scratch operand']
  %s0 = inlined_call_operand.vmem [shape: f32[8,8,128], index: 0, kind: input, shape index: {}]
  %s1 = inlined_call_operand.vmem [shape: f32[8,128], index: 1, kind: input, shape index: {}]
  %s2 = inlined_call_operand.vmem [shape: f32[128,128], index: 2, kind: input, shape index: {}]
  %s3 = inlined_call_operand.vmem [shape: f32[128,128], index: 3, kind: input, shape index: {}]
  %s4 = inlined_call_operand.vmem [shape: f32[1,128], index: 4, kind: input, shape index: {}]
  %s5 = inlined_call_operand.hbm [shape: f32[128,128], index: 5, kind: input, shape index: {}]
  %s6 = inlined_call_operand.vmem [shape: f32[1,128], index: 6, kind: input, shape index: {}]
  %s7 = inlined_call_operand.hbm [shape: f32[8,8,128], index: 7, kind: output, shape index: {0}]
  %s8 = inlined_call_operand.hbm [shape: f32[8,8,128], index: 8, kind: output, shape index: {1}]
  %9 = xla_tuple %s7, %s8
  %s10 = sld [smem:[#allocation0]]
  $region77: #{_rnn_sequence_impl.1} parent=0
    _
  %s12 = ssub.s32 1, %s10
  %s13 = scalar_select 0, %s12, %s10
  $region1: #{_rnn_sequence_impl.1} parent=0
    #allocation3 [shape = 'u8[65536]{0}', space=vmem, size = 0x10000, scoped, tag = 'input window, operand 5, single buffered']
    #allocation4 [shape = 's32[2]{0}', space=sflag, size = 0x8, scoped, tag = 'scoped memory for _rnn_sequence_impl.1']
    #allocation5 [shape = 's32[2]{0}', space=sflag, size = 0x8, scoped, tag = 'scoped memory for _rnn_sequence_impl.1']
    #allocation6 [shape = 'u8[8192]{0}', space=vmem, size = 0x2000, scoped, tag = 'output window, operand 0']
    #allocation7 [shape = 'u8[8192]{0}', space=vmem, size = 0x2000, scoped, tag = 'output window, operand 1']
    #allocation8 [shape = 's32[2]{0}', space=sflag, size = 0x8, scoped, tag = 'scoped memory for _rnn_sequence_impl.1']
    %14 = vsyncpa [#allocation4], 0
    %15 = vsyncpa [#allocation5], 0
    %s16 = scalar_lea.sflag [#allocation5], 1
    %17 = vsyncpa %s16, 0
    %18 = vsyncpa [#allocation8], 0
    %s19 = scalar_lea.sflag [#allocation8], 1
    %20 = vsyncpa %s19, 0
    loop: start=0, step=1, limit=10
    $region2: #{_rnn_sequence_impl.1} parent=1 // loop_pre_header
      _
    $region3: #{_rnn_sequence_impl.1} parent=1 // loop_header
      %s22 = sphi 0, %s26
      %p23 = scmp.ge.s32.totalorder %s22, 10
      %s29 = sphi 0, %s41
      %s30 = sphi 0, %s37
      %s31 = sphi 0, %s29
      %s32 = sphi 0, %s30
      %s33 = sphi 0, %s31
      %s34 = sphi 0, %s32
      %s46 = sphi 0, %s48
      %s49 = sphi 0, %s46
      %s50 = sphi 0, %s49
      %s66 = sphi 0, %s50
      %s72 = sphi 0, %s74
      %s75 = sphi 0, %s72
      %s76 = sphi 0, %s75
      %s92 = sphi 0, %s76
      %s96 = sphi 0, %s96
      %s98 = sphi 0, %s96
      %s99 = sphi 0, %s98
      %s113 = sphi 0, %s99
      %s117 = sphi 0, %s117
      %s119 = sphi 0, %s117
      %s120 = sphi 0, %s119
      %s134 = sphi 0, %s120
      %s138 = sphi 0, %s138
      %s140 = sphi 0, %s138
      %s141 = sphi 0, %s140
      %s155 = sphi 0, %s141
      %s159 = sphi 0, %s159
      %s161 = sphi 0, %s159
      %s162 = sphi 0, %s161
      %s176 = sphi 0, %s162
      %s180 = sphi 0, %s180
      %s182 = sphi 0, %s180
      %s183 = sphi 0, %s182
      %s197 = sphi 0, %s183
      %s205 = sphi 0, %s207
      %s208 = sphi 0, %s205
      %s209 = sphi 0, %s208
      %s225 = sphi 0, %s209
      %s233 = sphi 0, %s235
      %s236 = sphi 0, %s233
      %s237 = sphi 0, %s236
      %s253 = sphi 0, %s237
    $region4: #{_rnn_sequence_impl.1} parent=1 // loop_header_branch
      %25 = sbr.rel (%p23) target = $region8
    $region5: #{_rnn_sequence_impl.1} parent=1 // loop_body
      %s27 = ssub.s32 %s22, 1
      %s28 = ssub.s32 %s22, 2
      %s35 = sadd.s32 1, %s30
      %p36 = scmp.ge.s32.totalorder %s35, 8
      %s37 = scalar_select %p36, 0, %s35
      %s38 = sadd.s32 1, %s29
      %s39 = scalar_select %p36, %s38, %s29
      %p40 = scmp.ge.s32.totalorder %s39, 1
      %s41 = scalar_select %p40, 0, %s39
      %s42 = ssub.s32 %s30, %s37
      %s43 = ssub.s32 %s29, %s41
      %s44 = sor.u32 %s42, %s43
      %p45 = scmp.eq.s32.totalorder %s44, 0
      %s47 = sadd.s32 %s46, 1
      %s48 = scalar_select %p45, %s46, %s47
      %p51 = pneg %p45
      %p52 = scmp.eq.s32.totalorder %s22, 7
      %p53 = por %p51, %p52
      %p54 = scmp.ne.s32.totalorder %s46, %s49
      %p55 = scmp.eq.s32.totalorder %s22, 0
      %p56 = por %p54, %p55
      %p57 = scmp.ne.s32.totalorder %s46, %s49
      %p58 = scmp.eq.s32.totalorder %s27, 7
      %p59 = por %p57, %p58
      %p60 = scmp.ne.s32.totalorder %s49, %s50
      %p61 = scmp.eq.s32.totalorder %s27, 0
      %p62 = por %p60, %p61
      %p63 = scmp.ne.s32.totalorder %s49, %s50
      %p64 = scmp.eq.s32.totalorder %s28, 7
      %p65 = por %p63, %p64
      %p67 = scmp.ne.s32.totalorder %s50, %s66
      %p68 = scmp.eq.s32.totalorder %s28, 0
      %p69 = por %p67, %p68
      %s70 = ssub.s32 %s29, %s41
      %p71 = scmp.eq.s32.totalorder %s70, 0
      %s73 = sadd.s32 %s72, 1
      %s74 = scalar_select %p71, %s72, %s73
      %p77 = pneg %p71
      %p78 = scmp.eq.s32.totalorder %s22, 7
      %p79 = por %p77, %p78
      %p80 = scmp.ne.s32.totalorder %s72, %s75
      %p81 = scmp.eq.s32.totalorder %s22, 0
      %p82 = por %p80, %p81
      %p83 = scmp.ne.s32.totalorder %s72, %s75
      %p84 = scmp.eq.s32.totalorder %s27, 7
      %p85 = por %p83, %p84
      %p86 = scmp.ne.s32.totalorder %s75, %s76
      %p87 = scmp.eq.s32.totalorder %s27, 0
      %p88 = por %p86, %p87
      %p89 = scmp.ne.s32.totalorder %s75, %s76
      %p90 = scmp.eq.s32.totalorder %s28, 7
      %p91 = por %p89, %p90
      %p93 = scmp.ne.s32.totalorder %s76, %s92
      %p94 = scmp.eq.s32.totalorder %s28, 0
      %p95 = por %p93, %p94
      %s97 = sadd.s32 %s96, 1
      %p100 = scmp.eq.s32.totalorder %s22, 7
      %p101 = scmp.ne.s32.totalorder %s96, %s98
      %p102 = scmp.eq.s32.totalorder %s22, 0
      %p103 = por %p101, %p102
      %p104 = scmp.ne.s32.totalorder %s96, %s98
      %p105 = scmp.eq.s32.totalorder %s27, 7
      %p106 = por %p104, %p105
      %p107 = scmp.ne.s32.totalorder %s98, %s99
      %p108 = scmp.eq.s32.totalorder %s27, 0
      %p109 = por %p107, %p108
      %p110 = scmp.ne.s32.totalorder %s98, %s99
      %p111 = scmp.eq.s32.totalorder %s28, 7
      %p112 = por %p110, %p111
      %p114 = scmp.ne.s32.totalorder %s99, %s113
      %p115 = scmp.eq.s32.totalorder %s28, 0
      %p116 = por %p114, %p115
      %s118 = sadd.s32 %s117, 1
      %p121 = scmp.eq.s32.totalorder %s22, 7
      %p122 = scmp.ne.s32.totalorder %s117, %s119
      %p123 = scmp.eq.s32.totalorder %s22, 0
      %p124 = por %p122, %p123
      %p125 = scmp.ne.s32.totalorder %s117, %s119
      %p126 = scmp.eq.s32.totalorder %s27, 7
      %p127 = por %p125, %p126
      %p128 = scmp.ne.s32.totalorder %s119, %s120
      %p129 = scmp.eq.s32.totalorder %s27, 0
      %p130 = por %p128, %p129
      %p131 = scmp.ne.s32.totalorder %s119, %s120
      %p132 = scmp.eq.s32.totalorder %s28, 7
      %p133 = por %p131, %p132
      %p135 = scmp.ne.s32.totalorder %s120, %s134
      %p136 = scmp.eq.s32.totalorder %s28, 0
      %p137 = por %p135, %p136
      %s139 = sadd.s32 %s138, 1
      %p142 = scmp.eq.s32.totalorder %s22, 7
      %p143 = scmp.ne.s32.totalorder %s138, %s140
      %p144 = scmp.eq.s32.totalorder %s22, 0
      %p145 = por %p143, %p144
      %p146 = scmp.ne.s32.totalorder %s138, %s140
      %p147 = scmp.eq.s32.totalorder %s27, 7
      %p148 = por %p146, %p147
      %p149 = scmp.ne.s32.totalorder %s140, %s141
      %p150 = scmp.eq.s32.totalorder %s27, 0
      %p151 = por %p149, %p150
      %p152 = scmp.ne.s32.totalorder %s140, %s141
      %p153 = scmp.eq.s32.totalorder %s28, 7
      %p154 = por %p152, %p153
      %p156 = scmp.ne.s32.totalorder %s141, %s155
      %p157 = scmp.eq.s32.totalorder %s28, 0
      %p158 = por %p156, %p157
      %s160 = sadd.s32 %s159, 1
      %p163 = scmp.eq.s32.totalorder %s22, 7
      %p164 = scmp.ne.s32.totalorder %s159, %s161
      %p165 = scmp.eq.s32.totalorder %s22, 0
      %p166 = por %p164, %p165
      %p167 = scmp.ne.s32.totalorder %s159, %s161
      %p168 = scmp.eq.s32.totalorder %s27, 7
      %p169 = por %p167, %p168
      %p170 = scmp.ne.s32.totalorder %s161, %s162
      %p171 = scmp.eq.s32.totalorder %s27, 0
      %p172 = por %p170, %p171
      %p173 = scmp.ne.s32.totalorder %s161, %s162
      %p174 = scmp.eq.s32.totalorder %s28, 7
      %p175 = por %p173, %p174
      %p177 = scmp.ne.s32.totalorder %s162, %s176
      %p178 = scmp.eq.s32.totalorder %s28, 0
      %p179 = por %p177, %p178
      %s181 = sadd.s32 %s180, 1
      %p184 = scmp.eq.s32.totalorder %s22, 7
      %p185 = scmp.ne.s32.totalorder %s180, %s182
      %p186 = scmp.eq.s32.totalorder %s22, 0
      %p187 = por %p185, %p186
      %p188 = scmp.ne.s32.totalorder %s180, %s182
      %p189 = scmp.eq.s32.totalorder %s27, 7
      %p190 = por %p188, %p189
      %p191 = scmp.ne.s32.totalorder %s182, %s183
      %p192 = scmp.eq.s32.totalorder %s27, 0
      %p193 = por %p191, %p192
      %p194 = scmp.ne.s32.totalorder %s182, %s183
      %p195 = scmp.eq.s32.totalorder %s28, 7
      %p196 = por %p194, %p195
      %p198 = scmp.ne.s32.totalorder %s183, %s197
      %p199 = scmp.eq.s32.totalorder %s28, 0
      %p200 = por %p198, %p199
      %s201 = ssub.s32 %s30, %s37
      %s202 = ssub.s32 %s29, %s41
      %s203 = sor.u32 %s201, %s202
      %p204 = scmp.eq.s32.totalorder %s203, 0
      %s206 = sadd.s32 %s205, 1
      %s207 = scalar_select %p204, %s205, %s206
      %p210 = pneg %p204
      %p211 = scmp.eq.s32.totalorder %s22, 7
      %p212 = por %p210, %p211
      %p213 = scmp.ne.s32.totalorder %s205, %s208
      %p214 = scmp.eq.s32.totalorder %s22, 0
      %p215 = por %p213, %p214
      %p216 = scmp.ne.s32.totalorder %s205, %s208
      %p217 = scmp.eq.s32.totalorder %s27, 7
      %p218 = por %p216, %p217
      %p219 = scmp.ne.s32.totalorder %s208, %s209
      %p220 = scmp.eq.s32.totalorder %s27, 0
      %p221 = por %p219, %p220
      %p222 = scmp.ne.s32.totalorder %s208, %s209
      %p223 = scmp.eq.s32.totalorder %s28, 7
      %p224 = por %p222, %p223
      %p226 = scmp.ne.s32.totalorder %s209, %s225
      %p227 = scmp.eq.s32.totalorder %s28, 0
      %p228 = por %p226, %p227
      %s229 = ssub.s32 %s30, %s37
      %s230 = ssub.s32 %s29, %s41
      %s231 = sor.u32 %s229, %s230
      %p232 = scmp.eq.s32.totalorder %s231, 0
      %s234 = sadd.s32 %s233, 1
      %s235 = scalar_select %p232, %s233, %s234
      %p238 = pneg %p232
      %p239 = scmp.eq.s32.totalorder %s22, 7
      %p240 = por %p238, %p239
      %p241 = scmp.ne.s32.totalorder %s233, %s236
      %p242 = scmp.eq.s32.totalorder %s22, 0
      %p243 = por %p241, %p242
      %p244 = scmp.ne.s32.totalorder %s233, %s236
      %p245 = scmp.eq.s32.totalorder %s27, 7
      %p246 = por %p244, %p245
      %p247 = scmp.ne.s32.totalorder %s236, %s237
      %p248 = scmp.eq.s32.totalorder %s27, 0
      %p249 = por %p247, %p248
      %p250 = scmp.ne.s32.totalorder %s236, %s237
      %p251 = scmp.eq.s32.totalorder %s28, 7
      %p252 = por %p250, %p251
      %p254 = scmp.ne.s32.totalorder %s237, %s253
      %p255 = scmp.eq.s32.totalorder %s28, 0
      %p256 = por %p254, %p255
      %p257 = scmp.le.s32.totalorder 1, %s22
      %p258 = scmp.lt.s32.totalorder %s22, 9
      %p259 = pnand %p257, %p258
      %p260 = pneg %p259
      // Predicated region
      $region9: #{_rnn_sequence_impl.1} parent=5 // pred_check
        _
      $region10: #{_rnn_sequence_impl.1} parent=5 // pred_check_branch
        %262 = sbr.rel (%p259) target = $region12
      $region11: #{_rnn_sequence_impl.1} parent=5 // pred_region
        %s263 = ssub.s32 %s22, 1
        // Predicated region
        $region13: #{_rnn_sequence_impl.1} parent=11 // pred_check
          %p264 = pneg %p88
        $region14: #{_rnn_sequence_impl.1} parent=11 // pred_check_branch
          %266 = sbr.rel (%p264) target = $region16
        $region15: #{_rnn_sequence_impl.1} parent=11 // pred_region
          %p267 = scmp.lt.s32.totalorder %s31, 0
          %s268 = scalar_select %p267, %s31, 0
          %s269 = smul.addr %s268, 8
          %s270 = scalar_lea.vmem %s1, %s269
        $region16: #{_rnn_sequence_impl.1} parent=11 // pred_fallthru
          _
        // Predicated region
        $region17: #{_rnn_sequence_impl.1} parent=11 // pred_check
          %p271 = pneg %p109
        $region18: #{_rnn_sequence_impl.1} parent=11 // pred_check_branch
          %273 = sbr.rel (%p271) target = $region20
        $region19: #{_rnn_sequence_impl.1} parent=11 // pred_region
          _
        $region20: #{_rnn_sequence_impl.1} parent=11 // pred_fallthru
          _
        // Predicated region
        $region21: #{_rnn_sequence_impl.1} parent=11 // pred_check
          %p274 = pneg %p130
        $region22: #{_rnn_sequence_impl.1} parent=11 // pred_check_branch
          %276 = sbr.rel (%p274) target = $region24
        $region23: #{_rnn_sequence_impl.1} parent=11 // pred_region
          _
        $region24: #{_rnn_sequence_impl.1} parent=11 // pred_fallthru
          _
        // Predicated region
        $region25: #{_rnn_sequence_impl.1} parent=11 // pred_check
          %p277 = pneg %p151
        $region26: #{_rnn_sequence_impl.1} parent=11 // pred_check_branch
          %279 = sbr.rel (%p277) target = $region28
        $region27: #{_rnn_sequence_impl.1} parent=11 // pred_region
          _
        $region28: #{_rnn_sequence_impl.1} parent=11 // pred_fallthru
          _
        // Predicated region
        $region29: #{_rnn_sequence_impl.1} parent=11 // pred_check
          %p280 = pneg %p172
        $region30: #{_rnn_sequence_impl.1} parent=11 // pred_check_branch
          %282 = sbr.rel (%p280) target = $region32
        $region31: #{_rnn_sequence_impl.1} parent=11 // pred_region
          %s284 = ssub.s32 2048, 2048
          %285 = vsyncadd [#allocation4], %s284
          %s286 = sshll.u32 [#allocation3], 4
          %s287 = int_to_ptr.vmem [resolvable:$true] %s286
          %292 = dma.hbm_to_vmem [thread:$0]  %s5, 2048, %s287, [#allocation4], 128, 128, 8
        $region32: #{_rnn_sequence_impl.1} parent=11 // pred_fallthru
          _
        // Predicated region
        $region33: #{_rnn_sequence_impl.1} parent=11 // pred_check
          %p293 = pneg %p193
        $region34: #{_rnn_sequence_impl.1} parent=11 // pred_check_branch
          %295 = sbr.rel (%p293) target = $region36
        $region35: #{_rnn_sequence_impl.1} parent=11 // pred_region
          _
        $region36: #{_rnn_sequence_impl.1} parent=11 // pred_fallthru
          _
      $region12: #{_rnn_sequence_impl.1} parent=5 // pred_fallthru
        _
      %p296 = scmp.lt.s32.totalorder %s22, 8
      // Predicated region
      $region37: #{_rnn_sequence_impl.1} parent=5 // pred_check
        %p297 = pneg %p296
      $region38: #{_rnn_sequence_impl.1} parent=5 // pred_check_branch
        %299 = sbr.rel (%p297) target = $region40
      $region39: #{_rnn_sequence_impl.1} parent=5 // pred_region
        // Predicated region
        $region41: #{_rnn_sequence_impl.1} parent=39 // pred_check
          %p300 = pneg %p56
        $region42: #{_rnn_sequence_impl.1} parent=39 // pred_check_branch
          %302 = sbr.rel (%p300) target = $region44
        $region43: #{_rnn_sequence_impl.1} parent=39 // pred_region
          %p303 = scmp.lt.s32.totalorder %s30, 7
          %s304 = scalar_select %p303, %s30, 7
          %p305 = scmp.lt.s32.totalorder %s29, 0
          %s306 = scalar_select %p305, %s29, 0
          %s307 = sadd.s32 %s306, %s304
          %s308 = smul.addr %s307, 8
          %s309 = scalar_lea.vmem %s0, %s308
        $region44: #{_rnn_sequence_impl.1} parent=39 // pred_fallthru
          _
      $region40: #{_rnn_sequence_impl.1} parent=5 // pred_fallthru
        _
      %p310 = scmp.le.s32.totalorder 1, %s22
      %p311 = scmp.lt.s32.totalorder %s22, 9
      %p312 = pnand %p310, %p311
      %p313 = pneg %p312
      // Predicated region
      $region45: #{_rnn_sequence_impl.1} parent=5 // pred_check
        _
      $region46: #{_rnn_sequence_impl.1} parent=5 // pred_check_branch
        %315 = sbr.rel (%p312) target = $region48
      $region47: #{_rnn_sequence_impl.1} parent=5 // pred_region
        %s316 = ssub.s32 %s22, 1
        // Predicated region
        $region49: #{_rnn_sequence_impl.1} parent=47 // pred_check
          %p317 = pneg %p172
        $region50: #{_rnn_sequence_impl.1} parent=47 // pred_check_branch
          %319 = sbr.rel (%p317) target = $region52
        $region51: #{_rnn_sequence_impl.1} parent=47 // pred_region
          %320 = dma.done [#allocation4], 2048
        $region52: #{_rnn_sequence_impl.1} parent=47 // pred_fallthru
          _
        %p321 = scmp.lt.s32.totalorder %s32, 7
        %s322 = scalar_select %p321, %s32, 7
        %p323 = scmp.lt.s32.totalorder %s31, 0
        %s324 = scalar_select %p323, %s31, 0
        %s325 = sadd.s32 %s324, %s322
        %s326 = smul.addr %s325, 8
        %s327 = scalar_lea.vmem %s0, %s326
        %p328 = pneg %p62
        %p329 = pneg %p59
        %p330 = scmp.lt.s32.totalorder %s31, 0
        %s331 = scalar_select %p330, %s31, 0
        %s332 = smul.addr %s331, 8
        %s333 = scalar_lea.vmem %s1, %s332
        %p334 = pneg %p88
        %p335 = pneg %p85
        %p336 = pneg %p109
        %p337 = pneg %p106
        %p338 = pneg %p130
        %p339 = pneg %p127
        %p340 = pneg %p151
        %p341 = pneg %p148
        %p342 = pneg %p172
        %p343 = pneg %p169
        %p344 = pneg %p193
        %p345 = pneg %p190
        %p346 = pneg %p221
        %p347 = pneg %p218
        %s348 = sand.u32 %s208, 1
        %s349 = scalar_lea.sflag [#allocation5], %s348
        %s350 = sand.u32 %s208, 1
        %s351 = smul.addr %s350, 8
        %s352 = scalar_lea.vmem [#allocation6], %s351
        %p353 = pneg %p249
        %p354 = pneg %p246
        %s355 = sand.u32 %s236, 1
        %s356 = scalar_lea.sflag [#allocation8], %s355
        %s357 = sand.u32 %s236, 1
        %s358 = smul.addr %s357, 8
        %s359 = scalar_lea.vmem [#allocation7], %s358
        %p360 = scmp.lt.s32.totalorder %s32, 7
        %s361 = scalar_select %p360, %s32, 7
        %p362 = scmp.lt.s32.totalorder %s31, 0
        %s363 = scalar_select %p362, %s31, 0
        %s364 = sadd.s32 %s363, %s361
        %s365 = smul.addr %s364, 8
        %s366 = scalar_lea.vmem %s0, %s365
        %p367 = scmp.lt.s32.totalorder %s31, 0
        %s368 = scalar_select %p367, %s31, 0
        %s369 = smul.addr %s368, 8
        %s370 = scalar_lea.vmem %s1, %s369
        %p371 = scmp.eq.s32.totalorder %s32, 0
        // Predicated region
        $region53: #{_rnn_sequence_impl.1} parent=47 // pred_check
          %p372 = pneg %p371
        $region54: #{_rnn_sequence_impl.1} parent=47 // pred_check_branch
          %374 = sbr.rel (%p372) target = $region56
        $region55: #{_rnn_sequence_impl.1} parent=47 // pred_region
          %v375 = vld [vmem:[%s370] sm:$0xff]
          %376 = vst [vmem:[#allocation2] sm:$0xff] %v375
        $region56: #{_rnn_sequence_impl.1} parent=47 // pred_fallthru
          _
        %v377 = vld [vmem:[%s366] sm:$0xff]
        %v378 = vld [vmem:[%s2] sm:$0xff]
        %v379 = vld [vmem:[%s2 + $0x8] sm:$0xff]
        %v380 = vld [vmem:[%s2 + $0x10] sm:$0xff]
        %v381 = vld [vmem:[%s2 + $0x18] sm:$0xff]
        %v382 = vld [vmem:[%s2 + $0x20] sm:$0xff]
        %v383 = vld [vmem:[%s2 + $0x28] sm:$0xff]
        %v384 = vld [vmem:[%s2 + $0x30] sm:$0xff]
        %v385 = vld [vmem:[%s2 + $0x38] sm:$0xff]
        %v386 = vld [vmem:[%s2 + $0x40] sm:$0xff]
        %v387 = vld [vmem:[%s2 + $0x48] sm:$0xff]
        %v388 = vld [vmem:[%s2 + $0x50] sm:$0xff]
        %v389 = vld [vmem:[%s2 + $0x58] sm:$0xff]
        %v390 = vld [vmem:[%s2 + $0x60] sm:$0xff]
        %v391 = vld [vmem:[%s2 + $0x68] sm:$0xff]
        %v392 = vld [vmem:[%s2 + $0x70] sm:$0xff]
        %v393 = vld [vmem:[%s2 + $0x78] sm:$0xff]
        %v394 = vld [vmem:[#allocation2] sm:$0xff]
        %v395 = vld [vmem:[%s3] sm:$0xff]
        %v396 = vld [vmem:[%s3 + $0x8] sm:$0xff]
        %v397 = vld [vmem:[%s3 + $0x10] sm:$0xff]
        %v398 = vld [vmem:[%s3 + $0x18] sm:$0xff]
        %v399 = vld [vmem:[%s3 + $0x20] sm:$0xff]
        %v400 = vld [vmem:[%s3 + $0x28] sm:$0xff]
        %v401 = vld [vmem:[%s3 + $0x30] sm:$0xff]
        %v402 = vld [vmem:[%s3 + $0x38] sm:$0xff]
        %v403 = vld [vmem:[%s3 + $0x40] sm:$0xff]
        %v404 = vld [vmem:[%s3 + $0x48] sm:$0xff]
        %v405 = vld [vmem:[%s3 + $0x50] sm:$0xff]
        %v406 = vld [vmem:[%s3 + $0x58] sm:$0xff]
        %v407 = vld [vmem:[%s3 + $0x60] sm:$0xff]
        %v408 = vld [vmem:[%s3 + $0x68] sm:$0xff]
        %v409 = vld [vmem:[%s3 + $0x70] sm:$0xff]
        %v410 = vld [vmem:[%s3 + $0x78] sm:$0xff]
        %411 = vmatprep.subr.mxu0 0.0
        %412 = vmatpush1.msra.mxu0 %v395
        %413 = vmatprep.subr.mxu0 0.0
        %414 = vmatpush1.msra.mxu0 %v396
        %415 = vmatprep.subr.mxu0 0.0
        %416 = vmatpush1.msra.mxu0 %v397
        %417 = vmatprep.subr.mxu0 0.0
        %418 = vmatpush1.msra.mxu0 %v398
        %419 = vmatprep.subr.mxu0 0.0
        %420 = vmatpush1.msra.mxu0 %v399
        %421 = vmatprep.subr.mxu0 0.0
        %422 = vmatpush1.msra.mxu0 %v400
        %423 = vmatprep.subr.mxu0 0.0
        %424 = vmatpush1.msra.mxu0 %v401
        %425 = vmatprep.subr.mxu0 0.0
        %426 = vmatpush1.msra.mxu0 %v402
        %427 = vmatprep.subr.mxu0 0.0
        %428 = vmatpush1.msra.mxu0 %v403
        %429 = vmatprep.subr.mxu0 0.0
        %430 = vmatpush1.msra.mxu0 %v404
        %431 = vmatprep.subr.mxu0 0.0
        %432 = vmatpush1.msra.mxu0 %v405
        %433 = vmatprep.subr.mxu0 0.0
        %434 = vmatpush1.msra.mxu0 %v406
        %435 = vmatprep.subr.mxu0 0.0
        %436 = vmatpush1.msra.mxu0 %v407
        %437 = vmatprep.subr.mxu0 0.0
        %438 = vmatpush1.msra.mxu0 %v408
        %439 = vmatprep.subr.mxu0 0.0
        %440 = vmatpush1.msra.mxu0 %v409
        %441 = vmatprep.subr.mxu0 0.0
        %442 = vmatpush1.msra.mxu0 %v410
        %443 = vmatprep.subr.mxu0 0.0
        %444 = vmatpush1.msra.mxu0 0.0
        %445 = vmatprep.subr.mxu0 0.0
        %446 = vmatpush1.msra.mxu0 0.0
        %447 = vmatprep.subr.mxu0 0.0
        %448 = vmatpush1.msra.mxu0 0.0
        %449 = vmatprep.subr.mxu0 0.0
        %450 = vmatpush1.msra.mxu0 0.0
        %451 = vmatprep.subr.mxu0 0.0
        %452 = vmatpush1.msra.mxu0 0.0
        %453 = vmatprep.subr.mxu0 0.0
        %454 = vmatpush1.msra.mxu0 0.0
        %455 = vmatprep.subr.mxu0 0.0
        %456 = vmatpush1.msra.mxu0 0.0
        %457 = vmatprep.subr.mxu0 0.0
        %458 = vmatpush1.msra.mxu0 0.0
        %459 = vmatprep.subr.mxu0 0.0
        %460 = vmatpush1.msra.mxu0 0.0
        %461 = vmatprep.subr.mxu0 0.0
        %462 = vmatpush1.msra.mxu0 0.0
        %463 = vmatprep.subr.mxu0 0.0
        %464 = vmatpush1.msra.mxu0 0.0
        %465 = vmatprep.subr.mxu0 0.0
        %466 = vmatpush1.msra.mxu0 0.0
        %467 = vmatprep.subr.mxu0 0.0
        %468 = vmatpush1.msra.mxu0 0.0
        %469 = vmatprep.subr.mxu0 0.0
        %470 = vmatpush1.msra.mxu0 0.0
        %471 = vmatprep.subr.mxu0 0.0
        %472 = vmatpush1.msra.mxu0 0.0
        %473 = vmatprep.subr.mxu0 0.0
        %474 = vmatpush1.msra.mxu0 0.0
        %475 = vmatprep.mubr.f32.mxu0 0.0
        %476 = vmatmul.mubr.f32.gmra.mrb[0].mxu0 %v394
        %v477 = vpop.f32.mrb[0].mxu0
        %v478 = vadd.f32 0.0, %v477
        %v479 = vpop.f32.mrb[0].mxu0
        %480 = vdwg.mxu0
        %481 = vmatprep.subr.mxu0 0.0
        %482 = vmatpush1.msra.mxu0 %v378
        %483 = vmatprep.subr.mxu0 0.0
        %484 = vmatpush1.msra.mxu0 %v379
        %485 = vmatprep.subr.mxu0 0.0
        %486 = vmatpush1.msra.mxu0 %v380
        %487 = vmatprep.subr.mxu0 0.0
        %488 = vmatpush1.msra.mxu0 %v381
        %489 = vmatprep.subr.mxu0 0.0
        %490 = vmatpush1.msra.mxu0 %v382
        %491 = vmatprep.subr.mxu0 0.0
        %492 = vmatpush1.msra.mxu0 %v383
        %493 = vmatprep.subr.mxu0 0.0
        %494 = vmatpush1.msra.mxu0 %v384
        %495 = vmatprep.subr.mxu0 0.0
        %496 = vmatpush1.msra.mxu0 %v385
        %497 = vmatprep.subr.mxu0 0.0
        %498 = vmatpush1.msra.mxu0 %v386
        %499 = vmatprep.subr.mxu0 0.0
        %500 = vmatpush1.msra.mxu0 %v387
        %501 = vmatprep.subr.mxu0 0.0
        %502 = vmatpush1.msra.mxu0 %v388
        %503 = vmatprep.subr.mxu0 0.0
        %504 = vmatpush1.msra.mxu0 %v389
        %505 = vmatprep.subr.mxu0 0.0
        %506 = vmatpush1.msra.mxu0 %v390
        %507 = vmatprep.subr.mxu0 0.0
        %508 = vmatpush1.msra.mxu0 %v391
        %509 = vmatprep.subr.mxu0 0.0
        %510 = vmatpush1.msra.mxu0 %v392
        %511 = vmatprep.subr.mxu0 0.0
        %512 = vmatpush1.msra.mxu0 %v393
        %513 = vmatprep.subr.mxu0 0.0
        %514 = vmatpush1.msra.mxu0 0.0
        %515 = vmatprep.subr.mxu0 0.0
        %516 = vmatpush1.msra.mxu0 0.0
        %517 = vmatprep.subr.mxu0 0.0
        %518 = vmatpush1.msra.mxu0 0.0
        %519 = vmatprep.subr.mxu0 0.0
        %520 = vmatpush1.msra.mxu0 0.0
        %521 = vmatprep.subr.mxu0 0.0
        %522 = vmatpush1.msra.mxu0 0.0
        %523 = vmatprep.subr.mxu0 0.0
        %524 = vmatpush1.msra.mxu0 0.0
        %525 = vmatprep.subr.mxu0 0.0
        %526 = vmatpush1.msra.mxu0 0.0
        %527 = vmatprep.subr.mxu0 0.0
        %528 = vmatpush1.msra.mxu0 0.0
        %529 = vmatprep.subr.mxu0 0.0
        %530 = vmatpush1.msra.mxu0 0.0
        %531 = vmatprep.subr.mxu0 0.0
        %532 = vmatpush1.msra.mxu0 0.0
        %533 = vmatprep.subr.mxu0 0.0
        %534 = vmatpush1.msra.mxu0 0.0
        %535 = vmatprep.subr.mxu0 0.0
        %536 = vmatpush1.msra.mxu0 0.0
        %537 = vmatprep.subr.mxu0 0.0
        %538 = vmatpush1.msra.mxu0 0.0
        %539 = vmatprep.subr.mxu0 0.0
        %540 = vmatpush1.msra.mxu0 0.0
        %541 = vmatprep.subr.mxu0 0.0
        %542 = vmatpush1.msra.mxu0 0.0
        %543 = vmatprep.subr.mxu0 0.0
        %544 = vmatpush1.msra.mxu0 0.0
        %545 = vmatprep.mubr.f32.mxu0 0.0
        %546 = vmatmul.mubr.f32.gmra.mrb[0].mxu0 %v377
        %v547 = vpop.f32.mrb[0].mxu0
        %v548 = vadd.f32 %v478, %v547
        %v549 = vpop.f32.mrb[0].mxu0
        %550 = vdwg.mxu0
        %v551 = vld [vmem:[%s4] sm:$0x1]
        %v553 = vlaneseq
        %v554 = vshrl.u32 %v553, 7
        %v555 = vsub.s32 0, %v554
        %v556 = vrot.slane %v551, %v555
        %v558 = vadd.f32 %v548, %v556
        %v559 = vld [vmem:[#allocation3] sm:$0xff]
        %v560 = vld [vmem:[#allocation3 + $0x8] sm:$0xff]
        %v561 = vld [vmem:[#allocation3 + $0x10] sm:$0xff]
        %v562 = vld [vmem:[#allocation3 + $0x18] sm:$0xff]
        %v563 = vld [vmem:[#allocation3 + $0x20] sm:$0xff]
        %v564 = vld [vmem:[#allocation3 + $0x28] sm:$0xff]
        %v565 = vld [vmem:[#allocation3 + $0x30] sm:$0xff]
        %v566 = vld [vmem:[#allocation3 + $0x38] sm:$0xff]
        %v567 = vld [vmem:[#allocation3 + $0x40] sm:$0xff]
        %v568 = vld [vmem:[#allocation3 + $0x48] sm:$0xff]
        %v569 = vld [vmem:[#allocation3 + $0x50] sm:$0xff]
        %v570 = vld [vmem:[#allocation3 + $0x58] sm:$0xff]
        %v571 = vld [vmem:[#allocation3 + $0x60] sm:$0xff]
        %v572 = vld [vmem:[#allocation3 + $0x68] sm:$0xff]
        %v573 = vld [vmem:[#allocation3 + $0x70] sm:$0xff]
        %v574 = vld [vmem:[#allocation3 + $0x78] sm:$0xff]
        %v575 = vld [vmem:[%s6] sm:$0x1]
        %v577 = vlaneseq
        %v578 = vshrl.u32 %v577, 7
        %v579 = vsub.s32 0, %v578
        %v580 = vrot.slane %v575, %v579
        %582 = vmatprep.subr.mxu0 0.0
        %583 = vmatpush1.msra.mxu0 %v559
        %584 = vmatprep.subr.mxu0 0.0
        %585 = vmatpush1.msra.mxu0 %v560
        %586 = vmatprep.subr.mxu0 0.0
        %587 = vmatpush1.msra.mxu0 %v561
        %588 = vmatprep.subr.mxu0 0.0
        %589 = vmatpush1.msra.mxu0 %v562
        %590 = vmatprep.subr.mxu0 0.0
        %591 = vmatpush1.msra.mxu0 %v563
        %592 = vmatprep.subr.mxu0 0.0
        %593 = vmatpush1.msra.mxu0 %v564
        %594 = vmatprep.subr.mxu0 0.0
        %595 = vmatpush1.msra.mxu0 %v565
        %596 = vmatprep.subr.mxu0 0.0
        %597 = vmatpush1.msra.mxu0 %v566
        %598 = vmatprep.subr.mxu0 0.0
        %599 = vmatpush1.msra.mxu0 %v567
        %600 = vmatprep.subr.mxu0 0.0
        %601 = vmatpush1.msra.mxu0 %v568
        %602 = vmatprep.subr.mxu0 0.0
        %603 = vmatpush1.msra.mxu0 %v569
        %604 = vmatprep.subr.mxu0 0.0
        %605 = vmatpush1.msra.mxu0 %v570
        %606 = vmatprep.subr.mxu0 0.0
        %607 = vmatpush1.msra.mxu0 %v571
        %608 = vmatprep.subr.mxu0 0.0
        %609 = vmatpush1.msra.mxu0 %v572
        %610 = vmatprep.subr.mxu0 0.0
        %611 = vmatpush1.msra.mxu0 %v573
        %612 = vmatprep.subr.mxu0 0.0
        %613 = vmatpush1.msra.mxu0 %v574
        %614 = vmatprep.subr.mxu0 0.0
        %615 = vmatpush1.msra.mxu0 0.0
        %616 = vmatprep.subr.mxu0 0.0
        %617 = vmatpush1.msra.mxu0 0.0
        %618 = vmatprep.subr.mxu0 0.0
        %619 = vmatpush1.msra.mxu0 0.0
        %620 = vmatprep.subr.mxu0 0.0
        %621 = vmatpush1.msra.mxu0 0.0
        %622 = vmatprep.subr.mxu0 0.0
        %623 = vmatpush1.msra.mxu0 0.0
        %624 = vmatprep.subr.mxu0 0.0
        %625 = vmatpush1.msra.mxu0 0.0
        %626 = vmatprep.subr.mxu0 0.0
        %627 = vmatpush1.msra.mxu0 0.0
        %628 = vmatprep.subr.mxu0 0.0
        %629 = vmatpush1.msra.mxu0 0.0
        %630 = vmatprep.subr.mxu0 0.0
        %631 = vmatpush1.msra.mxu0 0.0
        %632 = vmatprep.subr.mxu0 0.0
        %633 = vmatpush1.msra.mxu0 0.0
        %634 = vmatprep.subr.mxu0 0.0
        %635 = vmatpush1.msra.mxu0 0.0
        %636 = vmatprep.subr.mxu0 0.0
        %637 = vmatpush1.msra.mxu0 0.0
        %638 = vmatprep.subr.mxu0 0.0
        %639 = vmatpush1.msra.mxu0 0.0
        %640 = vmatprep.subr.mxu0 0.0
        %641 = vmatpush1.msra.mxu0 0.0
        %642 = vmatprep.subr.mxu0 0.0
        %643 = vmatpush1.msra.mxu0 0.0
        %644 = vmatprep.subr.mxu0 0.0
        %645 = vmatpush1.msra.mxu0 0.0
        %646 = vmatprep.mubr.f32.mxu0 0.0
        %647 = vmatmul.mubr.f32.gmra.mrb[0].mxu0 %v558
        %v648 = vpop.f32.mrb[0].mxu0
        %v649 = vadd.f32 %v580, %v648
        %v650 = vpop.f32.mrb[0].mxu0
        %651 = vdwg.mxu0
        %652 = vst [vmem:[#allocation2] sm:$0xff] %v558
        %653 = vst [vmem:[%s352] sm:$0xff] %v558
        %654 = vst [vmem:[%s359] sm:$0xff] %v649
        %s655 = sand.u32 %s208, 1
        %s656 = scalar_lea.sflag [#allocation5], %s655
        %s657 = sand.u32 %s208, 1
        %s658 = smul.addr %s657, 8
        %s659 = scalar_lea.vmem [#allocation6], %s658
        %s660 = sand.u32 %s236, 1
        %s661 = scalar_lea.sflag [#allocation8], %s660
        %s662 = sand.u32 %s236, 1
        %s663 = smul.addr %s662, 8
        %s664 = scalar_lea.vmem [#allocation7], %s663
        // Predicated region
        $region57: #{_rnn_sequence_impl.1} parent=47 // pred_check
          %p665 = pneg %p218
        $region58: #{_rnn_sequence_impl.1} parent=47 // pred_check_branch
          %667 = sbr.rel (%p665) target = $region60
        $region59: #{_rnn_sequence_impl.1} parent=47 // pred_region
          %s669 = ssub.s32 128, 128
          %670 = vsyncadd %s656, %s669
          %s671 = sadd.s32 %s31, %s32
          %s672 = smul.addr %s671, 128
          %s673 = scalar_lea.hbm %s7, %s672
          %s675 = sshll.u32 %s659, 4
          %s676 = int_to_ptr.vmem [resolvable:$true] %s675
          %678 = dma.vmem_to_hbm [thread:$0]  %s676, 128, %s673, %s656
        $region60: #{_rnn_sequence_impl.1} parent=47 // pred_fallthru
          _
        // Predicated region
        $region61: #{_rnn_sequence_impl.1} parent=47 // pred_check
          %p679 = pneg %p246
        $region62: #{_rnn_sequence_impl.1} parent=47 // pred_check_branch
          %681 = sbr.rel (%p679) target = $region64
        $region63: #{_rnn_sequence_impl.1} parent=47 // pred_region
          %s683 = ssub.s32 128, 128
          %684 = vsyncadd %s661, %s683
          %s685 = sadd.s32 %s31, %s32
          %s686 = smul.addr %s685, 128
          %s687 = scalar_lea.hbm %s8, %s686
          %s689 = sshll.u32 %s664, 4
          %s690 = int_to_ptr.vmem [resolvable:$true] %s689
          %692 = dma.vmem_to_hbm [thread:$0]  %s690, 128, %s687, %s661
        $region64: #{_rnn_sequence_impl.1} parent=47 // pred_fallthru
          _
      $region48: #{_rnn_sequence_impl.1} parent=5 // pred_fallthru
        _
      %p693 = scmp.le.s32.totalorder 2, %s22
      // Predicated region
      $region65: #{_rnn_sequence_impl.1} parent=5 // pred_check
        %p694 = pneg %p693
      $region66: #{_rnn_sequence_impl.1} parent=5 // pred_check_branch
        %696 = sbr.rel (%p694) target = $region68
      $region67: #{_rnn_sequence_impl.1} parent=5 // pred_region
        %s697 = ssub.s32 %s22, 2
        // Predicated region
        $region69: #{_rnn_sequence_impl.1} parent=67 // pred_check
          %p698 = pneg %p224
        $region70: #{_rnn_sequence_impl.1} parent=67 // pred_check_branch
          %700 = sbr.rel (%p698) target = $region72
        $region71: #{_rnn_sequence_impl.1} parent=67 // pred_region
          %s701 = sand.u32 %s209, 1
          %s702 = scalar_lea.sflag [#allocation5], %s701
          %s703 = sand.u32 %s209, 1
          %s704 = smul.addr %s703, 8
          %s705 = scalar_lea.vmem [#allocation6], %s704
          %706 = dma.done %s702, 128
        $region72: #{_rnn_sequence_impl.1} parent=67 // pred_fallthru
          _
        // Predicated region
        $region73: #{_rnn_sequence_impl.1} parent=67 // pred_check
          %p707 = pneg %p252
        $region74: #{_rnn_sequence_impl.1} parent=67 // pred_check_branch
          %709 = sbr.rel (%p707) target = $region76
        $region75: #{_rnn_sequence_impl.1} parent=67 // pred_region
          %s710 = sand.u32 %s237, 1
          %s711 = scalar_lea.sflag [#allocation8], %s710
          %s712 = sand.u32 %s237, 1
          %s713 = smul.addr %s712, 8
          %s714 = scalar_lea.vmem [#allocation7], %s713
          %715 = dma.done %s711, 128
        $region76: #{_rnn_sequence_impl.1} parent=67 // pred_fallthru
          _
      $region68: #{_rnn_sequence_impl.1} parent=5 // pred_fallthru
        _
    $region6: #{_rnn_sequence_impl.1} parent=1 // loop_footer
      %s26 = sadd.s32 1, %s22
    $region7: #{_rnn_sequence_impl.1} parent=1 // loop_footer_branch
      %21 = sbr.rel target = $region3
    $region8: #{_rnn_sequence_impl.1} parent=1 // loop_exit
      _
    %716 = vsyncpa [#allocation4], 1
    %s717 = scalar_lea.sflag [#allocation4], 1
    %718 = vsyncpa %s717, 1
    %719 = vsyncpa [#allocation5], 1
    %s720 = scalar_lea.sflag [#allocation5], 1
    %721 = vsyncpa %s720, 1
    %722 = vsyncpa [#allocation8], 1
    %s723 = scalar_lea.sflag [#allocation8], 1
    %724 = vsyncpa %s723, 1

// kernel: _rnn_sequence_impl.1
$region0: #{_rnn_sequence_impl.1}
  #allocation0 [shape = 'u32[]', space=smem, size = 0x4, offset = 0x4, fixed_abs, tag = 'smem constant byte address 0x4 - core index']
  #allocation1 [shape = 'u32[144,128]{1,0:T(1,128)}', space=vmem, size = 0x12000, scoped, tag = 'internal scratch']
  #allocation2 [shape = 'f32[8,128]{1,0:T(8,128)}', space=vmem, size = 0x1000, scoped, tag = 'scratch operand']
  %s0 = inlined_call_operand.vmem [shape: f32[8,8,128], index: 0, kind: input, shape index: {}]
  %s1 = inlined_call_operand.vmem [shape: f32[8,128], index: 1, kind: input, shape index: {}]
  %s2 = inlined_call_operand.vmem [shape: f32[128,128], index: 2, kind: input, shape index: {}]
  %s3 = inlined_call_operand.vmem [shape: f32[128,128], index: 3, kind: input, shape index: {}]
  %s4 = inlined_call_operand.vmem [shape: f32[1,128], index: 4, kind: input, shape index: {}]
  %s5 = inlined_call_operand.hbm [shape: f32[128,128], index: 5, kind: input, shape index: {}]
  %s6 = inlined_call_operand.vmem [shape: f32[1,128], index: 6, kind: input, shape index: {}]
  %s7 = inlined_call_operand.hbm [shape: f32[8,8,128], index: 7, kind: output, shape index: {0}]
  %s8 = inlined_call_operand.hbm [shape: f32[8,8,128], index: 8, kind: output, shape index: {1}]
  %9 = xla_tuple %s7, %s8
  %s10 = sld [smem:[#allocation0]]
  $region77: #{_rnn_sequence_impl.1} parent=0
    _
  %s12 = ssub.s32 1, %s10
  %s13 = scalar_select 0, %s12, %s10
  $region1: #{_rnn_sequence_impl.1} parent=0
    #allocation3 [shape = 'u8[65536]{0}', space=vmem, size = 0x10000, scoped, tag = 'input window, operand 5, single buffered']
    #allocation4 [shape = 's32[2]{0}', space=sflag, size = 0x8, scoped, tag = 'scoped memory for _rnn_sequence_impl.1']
    #allocation5 [shape = 's32[2]{0}', space=sflag, size = 0x8, scoped, tag = 'scoped memory for _rnn_sequence_impl.1']
    #allocation6 [shape = 'u8[8192]{0}', space=vmem, size = 0x2000, scoped, tag = 'output window, operand 0']
    #allocation7 [shape = 'u8[8192]{0}', space=vmem, size = 0x2000, scoped, tag = 'output window, operand 1']
    #allocation8 [shape = 's32[2]{0}', space=sflag, size = 0x8, scoped, tag = 'scoped memory for _rnn_sequence_impl.1']
    %14 = vsyncpa [#allocation4], 0
    %15 = vsyncpa [#allocation5], 0
    %s16 = scalar_lea.sflag [#allocation5], 1
    %17 = vsyncpa %s16, 0
    %18 = vsyncpa [#allocation8], 0
    %s19 = scalar_lea.sflag [#allocation8], 1
    %20 = vsyncpa %s19, 0
    loop: start=0, step=1, limit=10
    $region2: #{_rnn_sequence_impl.1} parent=1 // loop_pre_header
      _
    $region3: #{_rnn_sequence_impl.1} parent=1 // loop_header
      %s22 = sphi 0, %s26
      %p23 = scmp.ge.s32.totalorder %s22, 10
      %s29 = sphi 0, %s41
      %s30 = sphi 0, %s37
      %s31 = sphi 0, %s29
      %s32 = sphi 0, %s30
      %s33 = sphi 0, %s31
      %s34 = sphi 0, %s32
      %s46 = sphi 0, %s48
      %s49 = sphi 0, %s46
      %s50 = sphi 0, %s49
      %s66 = sphi 0, %s50
      %s72 = sphi 0, %s74
      %s75 = sphi 0, %s72
      %s76 = sphi 0, %s75
      %s92 = sphi 0, %s76
      %s96 = sphi 0, %s96
      %s98 = sphi 0, %s96
      %s99 = sphi 0, %s98
      %s113 = sphi 0, %s99
      %s117 = sphi 0, %s117
      %s119 = sphi 0, %s117
      %s120 = sphi 0, %s119
      %s134 = sphi 0, %s120
      %s138 = sphi 0, %s138
      %s140 = sphi 0, %s138
      %s141 = sphi 0, %s140
      %s155 = sphi 0, %s141
      %s159 = sphi 0, %s159
      %s161 = sphi 0, %s159
      %s162 = sphi 0, %s161
      %s176 = sphi 0, %s162
      %s180 = sphi 0, %s180
      %s182 = sphi 0, %s180
      %s183 = sphi 0, %s182
      %s197 = sphi 0, %s183
      %s205 = sphi 0, %s207
      %s208 = sphi 0, %s205
      %s209 = sphi 0, %s208
      %s225 = sphi 0, %s209
      %s233 = sphi 0, %s235
      %s236 = sphi 0, %s233
      %s237 = sphi 0, %s236
      %s253 = sphi 0, %s237
    $region4: #{_rnn_sequence_impl.1} parent=1 // loop_header_branch
      %25 = sbr.rel (%p23) target = $region8
    $region5: #{_rnn_sequence_impl.1} parent=1 // loop_body
      %s27 = ssub.s32 %s22, 1
      %s28 = ssub.s32 %s22, 2
      %s35 = sadd.s32 1, %s30
      %p36 = scmp.ge.s32.totalorder %s35, 8
      %s37 = scalar_select %p36, 0, %s35
      %s38 = sadd.s32 1, %s29
      %s39 = scalar_select %p36, %s38, %s29
      %p40 = scmp.ge.s32.totalorder %s39, 1
      %s41 = scalar_select %p40, 0, %s39
      %s42 = ssub.s32 %s30, %s37
      %s43 = ssub.s32 %s29, %s41
      %s44 = sor.u32 %s42, %s43
      %p45 = scmp.eq.s32.totalorder %s44, 0
      %s47 = sadd.s32 %s46, 1
      %s48 = scalar_select %p45, %s46, %s47
      %p51 = pneg %p45
      %p52 = scmp.eq.s32.totalorder %s22, 7
      %p53 = por %p51, %p52
      %p54 = scmp.ne.s32.totalorder %s46, %s49
      %p55 = scmp.eq.s32.totalorder %s22, 0
      %p56 = por %p54, %p55
      %p57 = scmp.ne.s32.totalorder %s46, %s49
      %p58 = scmp.eq.s32.totalorder %s27, 7
      %p59 = por %p57, %p58
      %p60 = scmp.ne.s32.totalorder %s49, %s50
      %p61 = scmp.eq.s32.totalorder %s27, 0
      %p62 = por %p60, %p61
      %p63 = scmp.ne.s32.totalorder %s49, %s50
      %p64 = scmp.eq.s32.totalorder %s28, 7
      %p65 = por %p63, %p64
      %p67 = scmp.ne.s32.totalorder %s50, %s66
      %p68 = scmp.eq.s32.totalorder %s28, 0
      %p69 = por %p67, %p68
      %s70 = ssub.s32 %s29, %s41
      %p71 = scmp.eq.s32.totalorder %s70, 0
      %s73 = sadd.s32 %s72, 1
      %s74 = scalar_select %p71, %s72, %s73
      %p77 = pneg %p71
      %p78 = scmp.eq.s32.totalorder %s22, 7
      %p79 = por %p77, %p78
      %p80 = scmp.ne.s32.totalorder %s72, %s75
      %p81 = scmp.eq.s32.totalorder %s22, 0
      %p82 = por %p80, %p81
      %p83 = scmp.ne.s32.totalorder %s72, %s75
      %p84 = scmp.eq.s32.totalorder %s27, 7
      %p85 = por %p83, %p84
      %p86 = scmp.ne.s32.totalorder %s75, %s76
      %p87 = scmp.eq.s32.totalorder %s27, 0
      %p88 = por %p86, %p87
      %p89 = scmp.ne.s32.totalorder %s75, %s76
      %p90 = scmp.eq.s32.totalorder %s28, 7
      %p91 = por %p89, %p90
      %p93 = scmp.ne.s32.totalorder %s76, %s92
      %p94 = scmp.eq.s32.totalorder %s28, 0
      %p95 = por %p93, %p94
      %s97 = sadd.s32 %s96, 1
      %p100 = scmp.eq.s32.totalorder %s22, 7
      %p101 = scmp.ne.s32.totalorder %s96, %s98
      %p102 = scmp.eq.s32.totalorder %s22, 0
      %p103 = por %p101, %p102
      %p104 = scmp.ne.s32.totalorder %s96, %s98
      %p105 = scmp.eq.s32.totalorder %s27, 7
      %p106 = por %p104, %p105
      %p107 = scmp.ne.s32.totalorder %s98, %s99
      %p108 = scmp.eq.s32.totalorder %s27, 0
      %p109 = por %p107, %p108
      %p110 = scmp.ne.s32.totalorder %s98, %s99
      %p111 = scmp.eq.s32.totalorder %s28, 7
      %p112 = por %p110, %p111
      %p114 = scmp.ne.s32.totalorder %s99, %s113
      %p115 = scmp.eq.s32.totalorder %s28, 0
      %p116 = por %p114, %p115
      %s118 = sadd.s32 %s117, 1
      %p121 = scmp.eq.s32.totalorder %s22, 7
      %p122 = scmp.ne.s32.totalorder %s117, %s119
      %p123 = scmp.eq.s32.totalorder %s22, 0
      %p124 = por %p122, %p123
      %p125 = scmp.ne.s32.totalorder %s117, %s119
      %p126 = scmp.eq.s32.totalorder %s27, 7
      %p127 = por %p125, %p126
      %p128 = scmp.ne.s32.totalorder %s119, %s120
      %p129 = scmp.eq.s32.totalorder %s27, 0
      %p130 = por %p128, %p129
      %p131 = scmp.ne.s32.totalorder %s119, %s120
      %p132 = scmp.eq.s32.totalorder %s28, 7
      %p133 = por %p131, %p132
      %p135 = scmp.ne.s32.totalorder %s120, %s134
      %p136 = scmp.eq.s32.totalorder %s28, 0
      %p137 = por %p135, %p136
      %s139 = sadd.s32 %s138, 1
      %p142 = scmp.eq.s32.totalorder %s22, 7
      %p143 = scmp.ne.s32.totalorder %s138, %s140
      %p144 = scmp.eq.s32.totalorder %s22, 0
      %p145 = por %p143, %p144
      %p146 = scmp.ne.s32.totalorder %s138, %s140
      %p147 = scmp.eq.s32.totalorder %s27, 7
      %p148 = por %p146, %p147
      %p149 = scmp.ne.s32.totalorder %s140, %s141
      %p150 = scmp.eq.s32.totalorder %s27, 0
      %p151 = por %p149, %p150
      %p152 = scmp.ne.s32.totalorder %s140, %s141
      %p153 = scmp.eq.s32.totalorder %s28, 7
      %p154 = por %p152, %p153
      %p156 = scmp.ne.s32.totalorder %s141, %s155
      %p157 = scmp.eq.s32.totalorder %s28, 0
      %p158 = por %p156, %p157
      %s160 = sadd.s32 %s159, 1
      %p163 = scmp.eq.s32.totalorder %s22, 7
      %p164 = scmp.ne.s32.totalorder %s159, %s161
      %p165 = scmp.eq.s32.totalorder %s22, 0
      %p166 = por %p164, %p165
      %p167 = scmp.ne.s32.totalorder %s159, %s161
      %p168 = scmp.eq.s32.totalorder %s27, 7
      %p169 = por %p167, %p168
      %p170 = scmp.ne.s32.totalorder %s161, %s162
      %p171 = scmp.eq.s32.totalorder %s27, 0
      %p172 = por %p170, %p171
      %p173 = scmp.ne.s32.totalorder %s161, %s162
      %p174 = scmp.eq.s32.totalorder %s28, 7
      %p175 = por %p173, %p174
      %p177 = scmp.ne.s32.totalorder %s162, %s176
      %p178 = scmp.eq.s32.totalorder %s28, 0
      %p179 = por %p177, %p178
      %s181 = sadd.s32 %s180, 1
      %p184 = scmp.eq.s32.totalorder %s22, 7
      %p185 = scmp.ne.s32.totalorder %s180, %s182
      %p186 = scmp.eq.s32.totalorder %s22, 0
      %p187 = por %p185, %p186
      %p188 = scmp.ne.s32.totalorder %s180, %s182
      %p189 = scmp.eq.s32.totalorder %s27, 7
      %p190 = por %p188, %p189
      %p191 = scmp.ne.s32.totalorder %s182, %s183
      %p192 = scmp.eq.s32.totalorder %s27, 0
      %p193 = por %p191, %p192
      %p194 = scmp.ne.s32.totalorder %s182, %s183
      %p195 = scmp.eq.s32.totalorder %s28, 7
      %p196 = por %p194, %p195
      %p198 = scmp.ne.s32.totalorder %s183, %s197
      %p199 = scmp.eq.s32.totalorder %s28, 0
      %p200 = por %p198, %p199
      %s201 = ssub.s32 %s30, %s37
      %s202 = ssub.s32 %s29, %s41
      %s203 = sor.u32 %s201, %s202
      %p204 = scmp.eq.s32.totalorder %s203, 0
      %s206 = sadd.s32 %s205, 1
      %s207 = scalar_select %p204, %s205, %s206
      %p210 = pneg %p204
      %p211 = scmp.eq.s32.totalorder %s22, 7
      %p212 = por %p210, %p211
      %p213 = scmp.ne.s32.totalorder %s205, %s208
      %p214 = scmp.eq.s32.totalorder %s22, 0
      %p215 = por %p213, %p214
      %p216 = scmp.ne.s32.totalorder %s205, %s208
      %p217 = scmp.eq.s32.totalorder %s27, 7
      %p218 = por %p216, %p217
      %p219 = scmp.ne.s32.totalorder %s208, %s209
      %p220 = scmp.eq.s32.totalorder %s27, 0
      %p221 = por %p219, %p220
      %p222 = scmp.ne.s32.totalorder %s208, %s209
      %p223 = scmp.eq.s32.totalorder %s28, 7
      %p224 = por %p222, %p223
      %p226 = scmp.ne.s32.totalorder %s209, %s225
      %p227 = scmp.eq.s32.totalorder %s28, 0
      %p228 = por %p226, %p227
      %s229 = ssub.s32 %s30, %s37
      %s230 = ssub.s32 %s29, %s41
      %s231 = sor.u32 %s229, %s230
      %p232 = scmp.eq.s32.totalorder %s231, 0
      %s234 = sadd.s32 %s233, 1
      %s235 = scalar_select %p232, %s233, %s234
      %p238 = pneg %p232
      %p239 = scmp.eq.s32.totalorder %s22, 7
      %p240 = por %p238, %p239
      %p241 = scmp.ne.s32.totalorder %s233, %s236
      %p242 = scmp.eq.s32.totalorder %s22, 0
      %p243 = por %p241, %p242
      %p244 = scmp.ne.s32.totalorder %s233, %s236
      %p245 = scmp.eq.s32.totalorder %s27, 7
      %p246 = por %p244, %p245
      %p247 = scmp.ne.s32.totalorder %s236, %s237
      %p248 = scmp.eq.s32.totalorder %s27, 0
      %p249 = por %p247, %p248
      %p250 = scmp.ne.s32.totalorder %s236, %s237
      %p251 = scmp.eq.s32.totalorder %s28, 7
      %p252 = por %p250, %p251
      %p254 = scmp.ne.s32.totalorder %s237, %s253
      %p255 = scmp.eq.s32.totalorder %s28, 0
      %p256 = por %p254, %p255
      %p257 = scmp.le.s32.totalorder 1, %s22
      %p258 = scmp.lt.s32.totalorder %s22, 9
      %p259 = pnand %p257, %p258
      %p260 = pneg %p259
      // Predicated region
      $region9: #{_rnn_sequence_impl.1} parent=5 // pred_check
        _
      $region10: #{_rnn_sequence_impl.1} parent=5 // pred_check_branch
        %262 = sbr.rel (%p259) target = $region12
      $region11: #{_rnn_sequence_impl.1} parent=5 // pred_region
        %s263 = ssub.s32 %s22, 1
        // Predicated region
        $region13: #{_rnn_sequence_impl.1} parent=11 // pred_check
          %p264 = pneg %p88
        $region14: #{_rnn_sequence_impl.1} parent=11 // pred_check_branch
          %266 = sbr.rel (%p264) target = $region16
        $region15: #{_rnn_sequence_impl.1} parent=11 // pred_region
          %p267 = scmp.lt.s32.totalorder %s31, 0
          %s268 = scalar_select %p267, %s31, 0
          %s269 = smul.addr %s268, 8
          %s270 = scalar_lea.vmem %s1, %s269
        $region16: #{_rnn_sequence_impl.1} parent=11 // pred_fallthru
          _
        // Predicated region
        $region17: #{_rnn_sequence_impl.1} parent=11 // pred_check
          %p271 = pneg %p109
        $region18: #{_rnn_sequence_impl.1} parent=11 // pred_check_branch
          %273 = sbr.rel (%p271) target = $region20
        $region19: #{_rnn_sequence_impl.1} parent=11 // pred_region
          _
        $region20: #{_rnn_sequence_impl.1} parent=11 // pred_fallthru
          _
        // Predicated region
        $region21: #{_rnn_sequence_impl.1} parent=11 // pred_check
          %p274 = pneg %p130
        $region22: #{_rnn_sequence_impl.1} parent=11 // pred_check_branch
          %276 = sbr.rel (%p274) target = $region24
        $region23: #{_rnn_sequence_impl.1} parent=11 // pred_region
          _
        $region24: #{_rnn_sequence_impl.1} parent=11 // pred_fallthru
          _
        // Predicated region
        $region25: #{_rnn_sequence_impl.1} parent=11 // pred_check
          %p277 = pneg %p151
        $region26: #{_rnn_sequence_impl.1} parent=11 // pred_check_branch
          %279 = sbr.rel (%p277) target = $region28
        $region27: #{_rnn_sequence_impl.1} parent=11 // pred_region
          _
        $region28: #{_rnn_sequence_impl.1} parent=11 // pred_fallthru
          _
        // Predicated region
        $region29: #{_rnn_sequence_impl.1} parent=11 // pred_check
          %p280 = pneg %p172
        $region30: #{_rnn_sequence_impl.1} parent=11 // pred_check_branch
          %282 = sbr.rel (%p280) target = $region32
        $region31: #{_rnn_sequence_impl.1} parent=11 // pred_region
          %s284 = ssub.s32 2048, 2048
          %285 = vsyncadd [#allocation4], %s284
          %s286 = sshll.u32 [#allocation3], 4
          %s287 = int_to_ptr.vmem [resolvable:$true] %s286
          %292 = dma.hbm_to_vmem [thread:$0]  %s5, 2048, %s287, [#allocation4], 128, 128, 8
        $region32: #{_rnn_sequence_impl.1} parent=11 // pred_fallthru
          _
        // Predicated region
        $region33: #{_rnn_sequence_impl.1} parent=11 // pred_check
          %p293 = pneg %p193
        $region34: #{_rnn_sequence_impl.1} parent=11 // pred_check_branch
          %295 = sbr.rel (%p293) target = $region36
        $region35: #{_rnn_sequence_impl.1} parent=11 // pred_region
          _
        $region36: #{_rnn_sequence_impl.1} parent=11 // pred_fallthru
          _
      $region12: #{_rnn_sequence_impl.1} parent=5 // pred_fallthru
        _
      %p296 = scmp.lt.s32.totalorder %s22, 8
      // Predicated region
      $region37: #{_rnn_sequence_impl.1} parent=5 // pred_check
        %p297 = pneg %p296
      $region38: #{_rnn_sequence_impl.1} parent=5 // pred_check_branch
        %299 = sbr.rel (%p297) target = $region40
      $region39: #{_rnn_sequence_impl.1} parent=5 // pred_region
        // Predicated region
        $region41: #{_rnn_sequence_impl.1} parent=39 // pred_check
          %p300 = pneg %p56
        $region42: #{_rnn_sequence_impl.1} parent=39 // pred_check_branch
          %302 = sbr.rel (%p300) target = $region44
        $region43: #{_rnn_sequence_impl.1} parent=39 // pred_region
          %p303 = scmp.lt.s32.totalorder %s30, 7
          %s304 = scalar_select %p303, %s30, 7
          %p305 = scmp.lt.s32.totalorder %s29, 0
          %s306 = scalar_select %p305, %s29, 0
          %s307 = sadd.s32 %s306, %s304
          %s308 = smul.addr %s307, 8
          %s309 = scalar_lea.vmem %s0, %s308
        $region44: #{_rnn_sequence_impl.1} parent=39 // pred_fallthru
          _
      $region40: #{_rnn_sequence_impl.1} parent=5 // pred_fallthru
        _
      %p310 = scmp.le.s32.totalorder 1, %s22
      %p311 = scmp.lt.s32.totalorder %s22, 9
      %p312 = pnand %p310, %p311
      %p313 = pneg %p312
      // Predicated region
      $region45: #{_rnn_sequence_impl.1} parent=5 // pred_check
        _
      $region46: #{_rnn_sequence_impl.1} parent=5 // pred_check_branch
        %315 = sbr.rel (%p312) target = $region48
      $region47: #{_rnn_sequence_impl.1} parent=5 // pred_region
        %s316 = ssub.s32 %s22, 1
        // Predicated region
        $region49: #{_rnn_sequence_impl.1} parent=47 // pred_check
          %p317 = pneg %p172
        $region50: #{_rnn_sequence_impl.1} parent=47 // pred_check_branch
          %319 = sbr.rel (%p317) target = $region52
        $region51: #{_rnn_sequence_impl.1} parent=47 // pred_region
          %320 = dma.done [#allocation4], 2048
        $region52: #{_rnn_sequence_impl.1} parent=47 // pred_fallthru
          _
        %p321 = scmp.lt.s32.totalorder %s32, 7
        %s322 = scalar_select %p321, %s32, 7
        %p323 = scmp.lt.s32.totalorder %s31, 0
        %s324 = scalar_select %p323, %s31, 0
        %s325 = sadd.s32 %s324, %s322
        %s326 = smul.addr %s325, 8
        %s327 = scalar_lea.vmem %s0, %s326
        %p328 = pneg %p62
        %p329 = pneg %p59
        %p330 = scmp.lt.s32.totalorder %s31, 0
        %s331 = scalar_select %p330, %s31, 0
        %s332 = smul.addr %s331, 8
        %s333 = scalar_lea.vmem %s1, %s332
        %p334 = pneg %p88
        %p335 = pneg %p85
        %p336 = pneg %p109
        %p337 = pneg %p106
        %p338 = pneg %p130
        %p339 = pneg %p127
        %p340 = pneg %p151
        %p341 = pneg %p148
        %p342 = pneg %p172
        %p343 = pneg %p169
        %p344 = pneg %p193
        %p345 = pneg %p190
        %p346 = pneg %p221
        %p347 = pneg %p218
        %s348 = sand.u32 %s208, 1
        %s349 = scalar_lea.sflag [#allocation5], %s348
        %s350 = sand.u32 %s208, 1
        %s351 = smul.addr %s350, 8
        %s352 = scalar_lea.vmem [#allocation6], %s351
        %p353 = pneg %p249
        %p354 = pneg %p246
        %s355 = sand.u32 %s236, 1
        %s356 = scalar_lea.sflag [#allocation8], %s355
        %s357 = sand.u32 %s236, 1
        %s358 = smul.addr %s357, 8
        %s359 = scalar_lea.vmem [#allocation7], %s358
        %p360 = scmp.lt.s32.totalorder %s32, 7
        %s361 = scalar_select %p360, %s32, 7
        %p362 = scmp.lt.s32.totalorder %s31, 0
        %s363 = scalar_select %p362, %s31, 0
        %s364 = sadd.s32 %s363, %s361
        %s365 = smul.addr %s364, 8
        %s366 = scalar_lea.vmem %s0, %s365
        %p367 = scmp.lt.s32.totalorder %s31, 0
        %s368 = scalar_select %p367, %s31, 0
        %s369 = smul.addr %s368, 8
        %s370 = scalar_lea.vmem %s1, %s369
        %p371 = scmp.eq.s32.totalorder %s32, 0
        // Predicated region
        $region53: #{_rnn_sequence_impl.1} parent=47 // pred_check
          %p372 = pneg %p371
        $region54: #{_rnn_sequence_impl.1} parent=47 // pred_check_branch
          %374 = sbr.rel (%p372) target = $region56
        $region55: #{_rnn_sequence_impl.1} parent=47 // pred_region
          %v375 = vld [vmem:[%s370] sm:$0xff]
          %376 = vst [vmem:[#allocation2] sm:$0xff] %v375
        $region56: #{_rnn_sequence_impl.1} parent=47 // pred_fallthru
          _
        %v377 = vld [vmem:[%s366] sm:$0xff]
        %v378 = vld [vmem:[%s2] sm:$0xff]
        %v379 = vld [vmem:[%s2 + $0x8] sm:$0xff]
        %v380 = vld [vmem:[%s2 + $0x10] sm:$0xff]
        %v381 = vld [vmem:[%s2 + $0x18] sm:$0xff]
        %v382 = vld [vmem:[%s2 + $0x20] sm:$0xff]
        %v383 = vld [vmem:[%s2 + $0x28] sm:$0xff]
        %v384 = vld [vmem:[%s2 + $0x30] sm:$0xff]
        %v385 = vld [vmem:[%s2 + $0x38] sm:$0xff]
        %v386 = vld [vmem:[%s2 + $0x40] sm:$0xff]
        %v387 = vld [vmem:[%s2 + $0x48] sm:$0xff]
        %v388 = vld [vmem:[%s2 + $0x50] sm:$0xff]
        %v389 = vld [vmem:[%s2 + $0x58] sm:$0xff]
        %v390 = vld [vmem:[%s2 + $0x60] sm:$0xff]
        %v391 = vld [vmem:[%s2 + $0x68] sm:$0xff]
        %v392 = vld [vmem:[%s2 + $0x70] sm:$0xff]
        %v393 = vld [vmem:[%s2 + $0x78] sm:$0xff]
        %v394 = vld [vmem:[#allocation2] sm:$0xff]
        %v395 = vld [vmem:[%s3] sm:$0xff]
        %v396 = vld [vmem:[%s3 + $0x8] sm:$0xff]
        %v397 = vld [vmem:[%s3 + $0x10] sm:$0xff]
        %v398 = vld [vmem:[%s3 + $0x18] sm:$0xff]
        %v399 = vld [vmem:[%s3 + $0x20] sm:$0xff]
        %v400 = vld [vmem:[%s3 + $0x28] sm:$0xff]
        %v401 = vld [vmem:[%s3 + $0x30] sm:$0xff]
        %v402 = vld [vmem:[%s3 + $0x38] sm:$0xff]
        %v403 = vld [vmem:[%s3 + $0x40] sm:$0xff]
        %v404 = vld [vmem:[%s3 + $0x48] sm:$0xff]
        %v405 = vld [vmem:[%s3 + $0x50] sm:$0xff]
        %v406 = vld [vmem:[%s3 + $0x58] sm:$0xff]
        %v407 = vld [vmem:[%s3 + $0x60] sm:$0xff]
        %v408 = vld [vmem:[%s3 + $0x68] sm:$0xff]
        %v409 = vld [vmem:[%s3 + $0x70] sm:$0xff]
        %v410 = vld [vmem:[%s3 + $0x78] sm:$0xff]
        %411 = vmatprep.subr.mxu0 0.0
        %412 = vmatpush1.msra.mxu0 %v395
        %413 = vmatprep.subr.mxu0 0.0
        %414 = vmatpush1.msra.mxu0 %v396
        %415 = vmatprep.subr.mxu0 0.0
        %416 = vmatpush1.msra.mxu0 %v397
        %417 = vmatprep.subr.mxu0 0.0
        %418 = vmatpush1.msra.mxu0 %v398
        %419 = vmatprep.subr.mxu0 0.0
        %420 = vmatpush1.msra.mxu0 %v399
        %421 = vmatprep.subr.mxu0 0.0
        %422 = vmatpush1.msra.mxu0 %v400
        %423 = vmatprep.subr.mxu0 0.0
        %424 = vmatpush1.msra.mxu0 %v401
        %425 = vmatprep.subr.mxu0 0.0
        %426 = vmatpush1.msra.mxu0 %v402
        %427 = vmatprep.subr.mxu0 0.0
        %428 = vmatpush1.msra.mxu0 %v403
        %429 = vmatprep.subr.mxu0 0.0
        %430 = vmatpush1.msra.mxu0 %v404
        %431 = vmatprep.subr.mxu0 0.0
        %432 = vmatpush1.msra.mxu0 %v405
        %433 = vmatprep.subr.mxu0 0.0
        %434 = vmatpush1.msra.mxu0 %v406
        %435 = vmatprep.subr.mxu0 0.0
        %436 = vmatpush1.msra.mxu0 %v407
        %437 = vmatprep.subr.mxu0 0.0
        %438 = vmatpush1.msra.mxu0 %v408
        %439 = vmatprep.subr.mxu0 0.0
        %440 = vmatpush1.msra.mxu0 %v409
        %441 = vmatprep.subr.mxu0 0.0
        %442 = vmatpush1.msra.mxu0 %v410
        %443 = vmatprep.subr.mxu0 0.0
        %444 = vmatpush1.msra.mxu0 0.0
        %445 = vmatprep.subr.mxu0 0.0
        %446 = vmatpush1.msra.mxu0 0.0
        %447 = vmatprep.subr.mxu0 0.0
        %448 = vmatpush1.msra.mxu0 0.0
        %449 = vmatprep.subr.mxu0 0.0
        %450 = vmatpush1.msra.mxu0 0.0
        %451 = vmatprep.subr.mxu0 0.0
        %452 = vmatpush1.msra.mxu0 0.0
        %453 = vmatprep.subr.mxu0 0.0
        %454 = vmatpush1.msra.mxu0 0.0
        %455 = vmatprep.subr.mxu0 0.0
        %456 = vmatpush1.msra.mxu0 0.0
        %457 = vmatprep.subr.mxu0 0.0
        %458 = vmatpush1.msra.mxu0 0.0
        %459 = vmatprep.subr.mxu0 0.0
        %460 = vmatpush1.msra.mxu0 0.0
        %461 = vmatprep.subr.mxu0 0.0
        %462 = vmatpush1.msra.mxu0 0.0
        %463 = vmatprep.subr.mxu0 0.0
        %464 = vmatpush1.msra.mxu0 0.0
        %465 = vmatprep.subr.mxu0 0.0
        %466 = vmatpush1.msra.mxu0 0.0
        %467 = vmatprep.subr.mxu0 0.0
        %468 = vmatpush1.msra.mxu0 0.0
        %469 = vmatprep.subr.mxu0 0.0
        %470 = vmatpush1.msra.mxu0 0.0
        %471 = vmatprep.subr.mxu0 0.0
        %472 = vmatpush1.msra.mxu0 0.0
        %473 = vmatprep.subr.mxu0 0.0
        %474 = vmatpush1.msra.mxu0 0.0
        %475 = vmatprep.mubr.f32.mxu0 0.0
        %476 = vmatmul.mubr.f32.gmra.mrb[0].mxu0 %v394
        %v477 = vpop.f32.mrb[0].mxu0
        %v478 = vadd.f32 0.0, %v477
        %v479 = vpop.f32.mrb[0].mxu0
        %480 = vdwg.mxu0
        %481 = vmatprep.subr.mxu0 0.0
        %482 = vmatpush1.msra.mxu0 %v378
        %483 = vmatprep.subr.mxu0 0.0
        %484 = vmatpush1.msra.mxu0 %v379
        %485 = vmatprep.subr.mxu0 0.0
        %486 = vmatpush1.msra.mxu0 %v380
        %487 = vmatprep.subr.mxu0 0.0
        %488 = vmatpush1.msra.mxu0 %v381
        %489 = vmatprep.subr.mxu0 0.0
        %490 = vmatpush1.msra.mxu0 %v382
        %491 = vmatprep.subr.mxu0 0.0
        %492 = vmatpush1.msra.mxu0 %v383
        %493 = vmatprep.subr.mxu0 0.0
        %494 = vmatpush1.msra.mxu0 %v384
        %495 = vmatprep.subr.mxu0 0.0
        %496 = vmatpush1.msra.mxu0 %v385
        %497 = vmatprep.subr.mxu0 0.0
        %498 = vmatpush1.msra.mxu0 %v386
        %499 = vmatprep.subr.mxu0 0.0
        %500 = vmatpush1.msra.mxu0 %v387
        %501 = vmatprep.subr.mxu0 0.0
        %502 = vmatpush1.msra.mxu0 %v388
        %503 = vmatprep.subr.mxu0 0.0
        %504 = vmatpush1.msra.mxu0 %v389
        %505 = vmatprep.subr.mxu0 0.0
        %506 = vmatpush1.msra.mxu0 %v390
        %507 = vmatprep.subr.mxu0 0.0
        %508 = vmatpush1.msra.mxu0 %v391
        %509 = vmatprep.subr.mxu0 0.0
        %510 = vmatpush1.msra.mxu0 %v392
        %511 = vmatprep.subr.mxu0 0.0
        %512 = vmatpush1.msra.mxu0 %v393
        %513 = vmatprep.subr.mxu0 0.0
        %514 = vmatpush1.msra.mxu0 0.0
        %515 = vmatprep.subr.mxu0 0.0
        %516 = vmatpush1.msra.mxu0 0.0
        %517 = vmatprep.subr.mxu0 0.0
        %518 = vmatpush1.msra.mxu0 0.0
        %519 = vmatprep.subr.mxu0 0.0
        %520 = vmatpush1.msra.mxu0 0.0
        %521 = vmatprep.subr.mxu0 0.0
        %522 = vmatpush1.msra.mxu0 0.0
        %523 = vmatprep.subr.mxu0 0.0
        %524 = vmatpush1.msra.mxu0 0.0
        %525 = vmatprep.subr.mxu0 0.0
        %526 = vmatpush1.msra.mxu0 0.0
        %527 = vmatprep.subr.mxu0 0.0
        %528 = vmatpush1.msra.mxu0 0.0
        %529 = vmatprep.subr.mxu0 0.0
        %530 = vmatpush1.msra.mxu0 0.0
        %531 = vmatprep.subr.mxu0 0.0
        %532 = vmatpush1.msra.mxu0 0.0
        %533 = vmatprep.subr.mxu0 0.0
        %534 = vmatpush1.msra.mxu0 0.0
        %535 = vmatprep.subr.mxu0 0.0
        %536 = vmatpush1.msra.mxu0 0.0
        %537 = vmatprep.subr.mxu0 0.0
        %538 = vmatpush1.msra.mxu0 0.0
        %539 = vmatprep.subr.mxu0 0.0
        %540 = vmatpush1.msra.mxu0 0.0
        %541 = vmatprep.subr.mxu0 0.0
        %542 = vmatpush1.msra.mxu0 0.0
        %543 = vmatprep.subr.mxu0 0.0
        %544 = vmatpush1.msra.mxu0 0.0
        %545 = vmatprep.mubr.f32.mxu0 0.0
        %546 = vmatmul.mubr.f32.gmra.mrb[0].mxu0 %v377
        %v547 = vpop.f32.mrb[0].mxu0
        %v548 = vadd.f32 %v478, %v547
        %v549 = vpop.f32.mrb[0].mxu0
        %550 = vdwg.mxu0
        %v551 = vld [vmem:[%s4] sm:$0x1]
        %v553 = vlaneseq
        %v554 = vshrl.u32 %v553, 7
        %v555 = vsub.s32 0, %v554
        %v556 = vrot.slane %v551, %v555
        %v558 = vadd.f32 %v548, %v556
        %v559 = vld [vmem:[#allocation3] sm:$0xff]
        %v560 = vld [vmem:[#allocation3 + $0x8] sm:$0xff]
        %v561 = vld [vmem:[#allocation3 + $0x10] sm:$0xff]
        %v562 = vld [vmem:[#allocation3 + $0x18] sm:$0xff]
        %v563 = vld [vmem:[#allocation3 + $0x20] sm:$0xff]
        %v564 = vld [vmem:[#allocation3 + $0x28] sm:$0xff]
        %v565 = vld [vmem:[#allocation3 + $0x30] sm:$0xff]
        %v566 = vld [vmem:[#allocation3 + $0x38] sm:$0xff]
        %v567 = vld [vmem:[#allocation3 + $0x40] sm:$0xff]
        %v568 = vld [vmem:[#allocation3 + $0x48] sm:$0xff]
        %v569 = vld [vmem:[#allocation3 + $0x50] sm:$0xff]
        %v570 = vld [vmem:[#allocation3 + $0x58] sm:$0xff]
        %v571 = vld [vmem:[#allocation3 + $0x60] sm:$0xff]
        %v572 = vld [vmem:[#allocation3 + $0x68] sm:$0xff]
        %v573 = vld [vmem:[#allocation3 + $0x70] sm:$0xff]
        %v574 = vld [vmem:[#allocation3 + $0x78] sm:$0xff]
        %v575 = vld [vmem:[%s6] sm:$0x1]
        %v577 = vlaneseq
        %v578 = vshrl.u32 %v577, 7
        %v579 = vsub.s32 0, %v578
        %v580 = vrot.slane %v575, %v579
        %582 = vmatprep.subr.mxu0 0.0
        %583 = vmatpush1.msra.mxu0 %v559
        %584 = vmatprep.subr.mxu0 0.0
        %585 = vmatpush1.msra.mxu0 %v560
        %586 = vmatprep.subr.mxu0 0.0
        %587 = vmatpush1.msra.mxu0 %v561
        %588 = vmatprep.subr.mxu0 0.0
        %589 = vmatpush1.msra.mxu0 %v562
        %590 = vmatprep.subr.mxu0 0.0
        %591 = vmatpush1.msra.mxu0 %v563
        %592 = vmatprep.subr.mxu0 0.0
        %593 = vmatpush1.msra.mxu0 %v564
        %594 = vmatprep.subr.mxu0 0.0
        %595 = vmatpush1.msra.mxu0 %v565
        %596 = vmatprep.subr.mxu0 0.0
        %597 = vmatpush1.msra.mxu0 %v566
        %598 = vmatprep.subr.mxu0 0.0
        %599 = vmatpush1.msra.mxu0 %v567
        %600 = vmatprep.subr.mxu0 0.0
        %601 = vmatpush1.msra.mxu0 %v568
        %602 = vmatprep.subr.mxu0 0.0
        %603 = vmatpush1.msra.mxu0 %v569
        %604 = vmatprep.subr.mxu0 0.0
        %605 = vmatpush1.msra.mxu0 %v570
        %606 = vmatprep.subr.mxu0 0.0
        %607 = vmatpush1.msra.mxu0 %v571
        %608 = vmatprep.subr.mxu0 0.0
        %609 = vmatpush1.msra.mxu0 %v572
        %610 = vmatprep.subr.mxu0 0.0
        %611 = vmatpush1.msra.mxu0 %v573
        %612 = vmatprep.subr.mxu0 0.0
        %613 = vmatpush1.msra.mxu0 %v574
        %614 = vmatprep.subr.mxu0 0.0
        %615 = vmatpush1.msra.mxu0 0.0
        %616 = vmatprep.subr.mxu0 0.0
        %617 = vmatpush1.msra.mxu0 0.0
        %618 = vmatprep.subr.mxu0 0.0
        %619 = vmatpush1.msra.mxu0 0.0
        %620 = vmatprep.subr.mxu0 0.0
        %621 = vmatpush1.msra.mxu0 0.0
        %622 = vmatprep.subr.mxu0 0.0
        %623 = vmatpush1.msra.mxu0 0.0
        %624 = vmatprep.subr.mxu0 0.0
        %625 = vmatpush1.msra.mxu0 0.0
        %626 = vmatprep.subr.mxu0 0.0
        %627 = vmatpush1.msra.mxu0 0.0
        %628 = vmatprep.subr.mxu0 0.0
        %629 = vmatpush1.msra.mxu0 0.0
        %630 = vmatprep.subr.mxu0 0.0
        %631 = vmatpush1.msra.mxu0 0.0
        %632 = vmatprep.subr.mxu0 0.0
        %633 = vmatpush1.msra.mxu0 0.0
        %634 = vmatprep.subr.mxu0 0.0
        %635 = vmatpush1.msra.mxu0 0.0
        %636 = vmatprep.subr.mxu0 0.0
        %637 = vmatpush1.msra.mxu0 0.0
        %638 = vmatprep.subr.mxu0 0.0
        %639 = vmatpush1.msra.mxu0 0.0
        %640 = vmatprep.subr.mxu0 0.0
        %641 = vmatpush1.msra.mxu0 0.0
        %642 = vmatprep.subr.mxu0 0.0
        %643 = vmatpush1.msra.mxu0 0.0
        %644 = vmatprep.subr.mxu0 0.0
        %645 = vmatpush1.msra.mxu0 0.0
        %646 = vmatprep.mubr.f32.mxu0 0.0
        %647 = vmatmul.mubr.f32.gmra.mrb[0].mxu0 %v558
        %v648 = vpop.f32.mrb[0].mxu0
        %v649 = vadd.f32 %v580, %v648
        %v650 = vpop.f32.mrb[0].mxu0
        %651 = vdwg.mxu0
        %652 = vst [vmem:[#allocation2] sm:$0xff] %v558
        %653 = vst [vmem:[%s352] sm:$0xff] %v558
        %654 = vst [vmem:[%s359] sm:$0xff] %v649
        %s655 = sand.u32 %s208, 1
        %s656 = scalar_lea.sflag [#allocation5], %s655
        %s657 = sand.u32 %s208, 1
        %s658 = smul.addr %s657, 8
        %s659 = scalar_lea.vmem [#allocation6], %s658
        %s660 = sand.u32 %s236, 1
        %s661 = scalar_lea.sflag [#allocation8], %s660
        %s662 = sand.u32 %s236, 1
        %s663 = smul.addr %s662, 8
        %s664 = scalar_lea.vmem [#allocation7], %s663
        // Predicated region
        $region57: #{_rnn_sequence_impl.1} parent=47 // pred_check
          %p665 = pneg %p218
        $region58: #{_rnn_sequence_impl.1} parent=47 // pred_check_branch
          %667 = sbr.rel (%p665) target = $region60
        $region59: #{_rnn_sequence_impl.1} parent=47 // pred_region
          %s669 = ssub.s32 128, 128
          %670 = vsyncadd %s656, %s669
          %s671 = sadd.s32 %s31, %s32
          %s672 = smul.addr %s671, 128
          %s673 = scalar_lea.hbm %s7, %s672
          %s675 = sshll.u32 %s659, 4
          %s676 = int_to_ptr.vmem [resolvable:$true] %s675
          %678 = dma.vmem_to_hbm [thread:$0]  %s676, 128, %s673, %s656
        $region60: #{_rnn_sequence_impl.1} parent=47 // pred_fallthru
          _
        // Predicated region
        $region61: #{_rnn_sequence_impl.1} parent=47 // pred_check
          %p679 = pneg %p246
        $region62: #{_rnn_sequence_impl.1} parent=47 // pred_check_branch
          %681 = sbr.rel (%p679) target = $region64
        $region63: #{_rnn_sequence_impl.1} parent=47 // pred_region
          %s683 = ssub.s32 128, 128
          %684 = vsyncadd %s661, %s683
          %s685 = sadd.s32 %s31, %s32
          %s686 = smul.addr %s685, 128
          %s687 = scalar_lea.hbm %s8, %s686
          %s689 = sshll.u32 %s664, 4
          %s690 = int_to_ptr.vmem [resolvable:$true] %s689
          %692 = dma.vmem_to_hbm [thread:$0]  %s690, 128, %s687, %s661
        $region64: #{_rnn_sequence_impl.1} parent=47 // pred_fallthru
          _
      $region48: #{_rnn_sequence_impl.1} parent=5 // pred_fallthru
        _
      %p693 = scmp.le.s32.totalorder 2, %s22
      // Predicated region
      $region65: #{_rnn_sequence_impl.1} parent=5 // pred_check
        %p694 = pneg %p693
      $region66: #{_rnn_sequence_impl.1} parent=5 // pred_check_branch
        %696 = sbr.rel (%p694) target = $region68
      $region67: #{_rnn_sequence_impl.1} parent=5 // pred_region
        %s697 = ssub.s32 %s22, 2
        // Predicated region
        $region69: #{_rnn_sequence_impl.1} parent=67 // pred_check
          %p698 = pneg %p224
        $region70: #{_rnn_sequence_impl.1} parent=67 // pred_check_branch
          %700 = sbr.rel (%p698) target = $region72
        $region71: #{_rnn_sequence_impl.1} parent=67 // pred_region
          %s701 = sand.u32 %s209, 1
          %s702 = scalar_lea.sflag [#allocation5], %s701
          %s703 = sand.u32 %s209, 1
          %s704 = smul.addr %s703, 8
          %s705 = scalar_lea.vmem [#allocation6], %s704
          %706 = dma.done %s702, 128
        $region72: #{_rnn_sequence_impl.1} parent=67 // pred_fallthru
          _
        // Predicated region
        $region73: #{_rnn_sequence_impl.1} parent=67 // pred_check
          %p707 = pneg %p252
        $region74: #{_rnn_sequence_impl.1} parent=67 // pred_check_branch
          %709 = sbr.rel (%p707) target = $region76
        $region75: #{_rnn_sequence_impl.1} parent=67 // pred_region
          %s710 = sand.u32 %s237, 1
          %s711 = scalar_lea.sflag [#allocation8], %s710
          %s712 = sand.u32 %s237, 1
          %s713 = smul.addr %s712, 8
          %s714 = scalar_lea.vmem [#allocation7], %s713
          %715 = dma.done %s711, 128
        $region76: #{_rnn_sequence_impl.1} parent=67 // pred_fallthru
          _
      $region68: #{_rnn_sequence_impl.1} parent=5 // pred_fallthru
        _
    $region6: #{_rnn_sequence_impl.1} parent=1 // loop_footer
      %s26 = sadd.s32 1, %s22
    $region7: #{_rnn_sequence_impl.1} parent=1 // loop_footer_branch
      %21 = sbr.rel target = $region3
    $region8: #{_rnn_sequence_impl.1} parent=1 // loop_exit
      _
    %716 = vsyncpa [#allocation4], 1
    %s717 = scalar_lea.sflag [#allocation4], 1
    %718 = vsyncpa %s717, 1
    %719 = vsyncpa [#allocation5], 1
    %s720 = scalar_lea.sflag [#allocation5], 1
    %721 = vsyncpa %s720, 1
    %722 = vsyncpa [#allocation8], 1
    %s723 = scalar_lea.sflag [#allocation8], 1
    %724 = vsyncpa %s723, 1

</llo_original>
